<compile_context>
chip_gen: v7x
topology: tpu7x:2x2x1
jax: 0.10.0
libtpu: 0.0.40
codegen_flags: <defaults>
</compile_context>

<pallas_src>
import jax
import jax.numpy as jnp
from jax import lax
from jax.experimental import pallas as pl
from jax.experimental.pallas import tpu as pltpu

# ---- model hyper-parameters (small, synthetic) ----
N = 16            # number of graph nodes
F_IN = 8          # input feature dim (F)
H = 16            # hidden dim per head
HEADS = 2         # n_head
C = 4             # number of classes
D = HEADS * H     # concat width = 32
NEG_SLOPE = 0.2   # PyG GATConv default leaky-relu slope
NEG_INF = -1e30
LANES = 128

# ---- 2-D slab row layout (all bands 8-row aligned, 128-lane padded) ----
X_ROW, MASK_ROW = 0, 16
W1_ROW, W2_ROW, WC_ROW = 32, 40, 72
B1_ROW, B2_ROW, BC_ROW = 104, 112, 120
ROWS_2D = 128

# ---- 3-D per-head slab layout [HEADS, ROWS_3D, 128] ----
ADT1_COL, ADT2_COL = 0, 1                    # a_dst vectors packed down a lane (rows 0:D)
AST1_ROW, AST2_ROW, SEL_ROW = 32, 40, 48     # a_src rows / head-selector row (cols 0:D)
ROWS_3D = 56


def gat_kernel(s2_ref, s3_ref, out_ref):
    f32 = jnp.float32

    # ---- carve operands out of the two VMEM-resident slabs (static slices) ----
    x = s2_ref[X_ROW:X_ROW + N, 0:F_IN]                  # [N, F_IN]
    maskb = s2_ref[MASK_ROW:MASK_ROW + N, 0:N]           # [N, N]  additive {0, -1e30}
    w1 = s2_ref[W1_ROW:W1_ROW + F_IN, 0:D]               # [F_IN, D]
    w2 = s2_ref[W2_ROW:W2_ROW + D, 0:D]                  # [D, D]
    wc = s2_ref[WC_ROW:WC_ROW + D, :]                    # [D, 128]  (cols >= C are zero)
    b1 = s2_ref[B1_ROW:B1_ROW + 1, 0:D]                  # [1, D]
    b2 = s2_ref[B2_ROW:B2_ROW + 1, 0:D]                  # [1, D]
    bc = s2_ref[BC_ROW:BC_ROW + 1, :]                    # [1, 128]

    adT1 = s3_ref[:, 0:D, ADT1_COL:ADT1_COL + 1]         # [A, D, 1]  block-expanded a_dst (layer 1)
    adT2 = s3_ref[:, 0:D, ADT2_COL:ADT2_COL + 1]         # [A, D, 1]
    asT1 = s3_ref[:, AST1_ROW:AST1_ROW + 1, 0:D]         # [A, 1, D]  block-expanded a_src (layer 1)
    asT2 = s3_ref[:, AST2_ROW:AST2_ROW + 1, 0:D]         # [A, 1, D]
    sel = s3_ref[:, SEL_ROW:SEL_ROW + 1, 0:D]            # [A, 1, D]  1 inside own head block

    def gat_layer(h, w, asT, adT, bias):
        # feature projection (concat form, one MXU matmul)
        xw = jnp.dot(h, w, preferred_element_type=f32)                    # [N, D]
        # head-masked copies of xw (leading head batch axis)
        xw_h = xw[None, :, :] * sel                                       # [A, N, D]
        # attention logits straight from batched MXU dot_generals:
        #   a_src -> row layout [A,1,N], a_dst -> column layout [A,N,1]  (no transposes)
        a_src = lax.dot_general(asT, xw_h, (((2,), (2,)), ((0,), (0,))),
                                preferred_element_type=f32)               # [A, 1, N]
        a_dst = lax.dot_general(xw_h, adT, (((2,), (1,)), ((0,), (0,))),
                                preferred_element_type=f32)               # [A, N, 1]
        e = a_dst + a_src                                                 # [A, N, N]
        e = jnp.where(e >= 0.0, e, NEG_SLOPE * e) + maskb[None]           # leaky-relu + additive mask
        # masked softmax over source nodes (masked entries underflow to exact 0)
        m = jnp.max(e, axis=-1, keepdims=True)                            # [A, N, 1]
        p = jnp.exp(e - m)
        denom = jnp.sum(p, axis=-1, keepdims=True)                        # [A, N, 1]
        attn = p * pl.reciprocal(denom, approx=True)                      # [A, N, N]
        # one batched aggregation matmul; heads fold back to concat form by the sum
        agg = jnp.einsum('anj,ajd->and', attn, xw_h,
                         preferred_element_type=f32)                      # [A, N, D]
        return jnp.sum(agg, axis=0) + bias                                # [N, D]

    h1 = jnp.maximum(gat_layer(x, w1, asT1, adT1, b1), 0.0)               # relu
    h2 = jnp.maximum(gat_layer(h1, w2, asT2, adT2, b2), 0.0)              # relu
    # classifier: lane-dense [N, 128] store (cols >= C are exactly zero)
    out_ref[...] = jnp.dot(h2, wc, preferred_element_type=jnp.float32) + bc


def pack_inputs(x, adj, params):
    """Pack x / adjacency mask / all weights into two lane-padded f32 slabs."""
    (w1, as1, ad1, b1, w2, as2, ad2, b2, wc, bc) = params

    s2 = jnp.zeros((ROWS_2D, LANES), jnp.float32)
    s2 = s2.at[X_ROW:X_ROW + N, 0:F_IN].set(x)
    s2 = s2.at[MASK_ROW:MASK_ROW + N, 0:N].set(jnp.where(adj > 0, 0.0, NEG_INF))
    s2 = s2.at[W1_ROW:W1_ROW + F_IN, 0:D].set(w1)
    s2 = s2.at[W2_ROW:W2_ROW + D, 0:D].set(w2)
    s2 = s2.at[WC_ROW:WC_ROW + D, 0:C].set(wc)
    s2 = s2.at[B1_ROW, 0:D].set(b1[0])
    s2 = s2.at[B2_ROW, 0:D].set(b2[0])
    s2 = s2.at[BC_ROW, 0:C].set(bc[0])

    s3 = jnp.zeros((HEADS, ROWS_3D, LANES), jnp.float32)
    for a in range(HEADS):
        blk = slice(a * H, (a + 1) * H)
        s3 = s3.at[a, blk, ADT1_COL].set(ad1[a])     # a_dst layer 1, down lane 0
        s3 = s3.at[a, blk, ADT2_COL].set(ad2[a])     # a_dst layer 2, down lane 1
        s3 = s3.at[a, AST1_ROW, blk].set(as1[a])     # a_src layer 1, along lanes
        s3 = s3.at[a, AST2_ROW, blk].set(as2[a])     # a_src layer 2, along lanes
        s3 = s3.at[a, SEL_ROW, blk].set(1.0)         # head selector
    return s2, s3


@jax.jit
def gat_forward(x, adj, params):
    s2, s3 = pack_inputs(x, adj, params)
    vmem = pl.BlockSpec(memory_space=pltpu.MemorySpace.VMEM)
    out = pl.pallas_call(
        gat_kernel,
        out_shape=jax.ShapeDtypeStruct((N, LANES), jnp.float32),
        in_specs=[vmem, vmem],
        out_specs=vmem,
    )(s2, s3)
    return out[:, :C]


def gat_forward_ref(x, adj, params):
    """Independent pure-JAX reference (straightforward per-head formulation)."""
    (w1, as1, ad1, b1, w2, as2, ad2, b2, wc, bc) = params

    def conv(h, w, a_s, a_d, b):
        xw = h @ w
        outs = []
        for hh in range(HEADS):
            xh = xw[:, hh * H:(hh + 1) * H]
            al_s = jnp.sum(xh * a_s[hh], axis=-1, keepdims=True)
            al_d = jnp.sum(xh * a_d[hh], axis=-1, keepdims=True)
            e = al_d + al_s.T
            e = jnp.where(e >= 0, e, NEG_SLOPE * e)
            e = jnp.where(adj > 0, e, NEG_INF)
            p = jnp.exp(e - jnp.max(e, axis=-1, keepdims=True))
            p = jnp.where(adj > 0, p, 0.0)
            attn = p / jnp.sum(p, axis=-1, keepdims=True)
            outs.append(attn @ xh)
        return jnp.concatenate(outs, axis=-1) + b

    h1 = jnp.maximum(conv(x, w1, as1, ad1, b1), 0.0)
    h2 = jnp.maximum(conv(h1, w2, as2, ad2, b2), 0.0)
    return h2 @ wc + bc


def init_params(key):
    ks = jax.random.split(key, 10)

    def glorot(k, shape):
        fan_in, fan_out = shape[0], shape[-1]
        lim = jnp.sqrt(6.0 / (fan_in + fan_out))
        return jax.random.uniform(k, shape, jnp.float32, -lim, lim)

    w1 = glorot(ks[0], (F_IN, HEADS * H))
    as1 = glorot(ks[1], (HEADS, H))
    ad1 = glorot(ks[2], (HEADS, H))
    b1 = jnp.zeros((1, HEADS * H), jnp.float32)
    w2 = glorot(ks[3], (HEADS * H, HEADS * H))
    as2 = glorot(ks[4], (HEADS, H))
    ad2 = glorot(ks[5], (HEADS, H))
    b2 = jnp.zeros((1, HEADS * H), jnp.float32)
    wc = glorot(ks[6], (HEADS * H, C))
    bc = jax.random.uniform(ks[7], (1, C), jnp.float32, -0.1, 0.1)
    return (w1, as1, ad1, b1, w2, as2, ad2, b2, wc, bc)


def build_adj(edge_index, n):
    """Dense adjacency from edge_index [2, E] (src, dst) + self loops: adj[dst, src] = 1."""
    src, dst = edge_index
    adj = jnp.zeros((n, n), jnp.float32).at[dst, src].set(1.0)
    adj = jnp.maximum(adj, jnp.eye(n, dtype=jnp.float32))
    return adj


if __name__ == "__main__":
    key = jax.random.PRNGKey(0)
    k_x, k_p = jax.random.split(key)

    # node features
    x = jax.random.normal(k_x, (N, F_IN), jnp.float32)

    # deterministic small graph: bidirectional ring + a couple of chords
    src = jnp.arange(N)
    dst = (src + 1) % N
    edge_index = jnp.concatenate(
        [jnp.stack([src, dst]),
         jnp.stack([dst, src]),
         jnp.array([[0, 5], [8, 12]]),
         jnp.array([[8, 12], [0, 5]])],
        axis=1)
    adj = build_adj(edge_index, N)

    params = init_params(k_p)

    out = gat_forward(x, adj, params)
    out = jax.block_until_ready(out)

    ref = gat_forward_ref(x, adj, params)
    assert out.shape == (N, C)
    assert jnp.allclose(out, ref, atol=3e-3, rtol=3e-3), "mismatch vs reference"

    print("KERNEL_OK")
</pallas_src>

<mosaic_0001>
module attributes {stable_mosaic.version = 11 : i64} {
  func.func @gat_kernel(%arg0: memref<128x128xf32, #tpu.memory_space<vmem>>, %arg1: memref<2x56x128xf32, #tpu.memory_space<vmem>>, %arg2: memref<16x128xf32, #tpu.memory_space<vmem>>) attributes {dimension_semantics = [], scalar_prefetch = 0 : i64, scratch_operands = 0 : i64, tpu.core_type = #tpu.core_type<tc>} {
    %c0 = arith.constant 0 : index
    %c0_0 = arith.constant 0 : index
    %0 = vector.load %arg0[%c0, %c0_0] : memref<128x128xf32, #tpu.memory_space<vmem>>, vector<16x8xf32>
    %c16 = arith.constant 16 : index
    %c0_1 = arith.constant 0 : index
    %1 = vector.load %arg0[%c16, %c0_1] : memref<128x128xf32, #tpu.memory_space<vmem>>, vector<16x16xf32>
    %c32 = arith.constant 32 : index
    %c0_2 = arith.constant 0 : index
    %2 = vector.load %arg0[%c32, %c0_2] : memref<128x128xf32, #tpu.memory_space<vmem>>, vector<8x32xf32>
    %c40 = arith.constant 40 : index
    %c0_3 = arith.constant 0 : index
    %3 = vector.load %arg0[%c40, %c0_3] : memref<128x128xf32, #tpu.memory_space<vmem>>, vector<32x32xf32>
    %c72 = arith.constant 72 : index
    %c0_4 = arith.constant 0 : index
    %4 = vector.load %arg0[%c72, %c0_4] : memref<128x128xf32, #tpu.memory_space<vmem>>, vector<32x128xf32>
    %c104 = arith.constant 104 : index
    %c0_5 = arith.constant 0 : index
    %5 = vector.load %arg0[%c104, %c0_5] : memref<128x128xf32, #tpu.memory_space<vmem>>, vector<1x32xf32>
    %c112 = arith.constant 112 : index
    %c0_6 = arith.constant 0 : index
    %6 = vector.load %arg0[%c112, %c0_6] : memref<128x128xf32, #tpu.memory_space<vmem>>, vector<1x32xf32>
    %c120 = arith.constant 120 : index
    %c0_7 = arith.constant 0 : index
    %7 = vector.load %arg0[%c120, %c0_7] : memref<128x128xf32, #tpu.memory_space<vmem>>, vector<1x128xf32>
    %c0_8 = arith.constant 0 : index
    %c0_9 = arith.constant 0 : index
    %c0_10 = arith.constant 0 : index
    %8 = vector.load %arg1[%c0_8, %c0_9, %c0_10] : memref<2x56x128xf32, #tpu.memory_space<vmem>>, vector<2x32x1xf32>
    %c0_11 = arith.constant 0 : index
    %c0_12 = arith.constant 0 : index
    %c1 = arith.constant 1 : index
    %9 = vector.load %arg1[%c0_11, %c0_12, %c1] : memref<2x56x128xf32, #tpu.memory_space<vmem>>, vector<2x32x1xf32>
    %c0_13 = arith.constant 0 : index
    %c32_14 = arith.constant 32 : index
    %c0_15 = arith.constant 0 : index
    %10 = vector.load %arg1[%c0_13, %c32_14, %c0_15] : memref<2x56x128xf32, #tpu.memory_space<vmem>>, vector<2x1x32xf32>
    %c0_16 = arith.constant 0 : index
    %c40_17 = arith.constant 40 : index
    %c0_18 = arith.constant 0 : index
    %11 = vector.load %arg1[%c0_16, %c40_17, %c0_18] : memref<2x56x128xf32, #tpu.memory_space<vmem>>, vector<2x1x32xf32>
    %c0_19 = arith.constant 0 : index
    %c48 = arith.constant 48 : index
    %c0_20 = arith.constant 0 : index
    %12 = vector.load %arg1[%c0_19, %c48, %c0_20] : memref<2x56x128xf32, #tpu.memory_space<vmem>>, vector<2x1x32xf32>
    %cst = arith.constant dense<0.000000e+00> : vector<16x32xf32>
    %13 = tpu.matmul %0, %2, %cst {dimension_numbers = #tpu.dot_dimension_numbers<[1], [0], [0], [1], [0, 0, 1, 1], [], []>} : vector<16x8xf32>, vector<8x32xf32>, vector<16x32xf32> -> vector<16x32xf32>
    %14 = vector.shape_cast %13 : vector<16x32xf32> to vector<1x16x32xf32>
    %15 = vector.broadcast %14 : vector<1x16x32xf32> to vector<2x16x32xf32>
    %16 = vector.broadcast %12 : vector<2x1x32xf32> to vector<2x16x32xf32>
    %17 = arith.mulf %15, %16 : vector<2x16x32xf32>
    %cst_21 = arith.constant dense<0.000000e+00> : vector<2x1x16xf32>
    %18 = tpu.matmul %10, %17, %cst_21 {dimension_numbers = #tpu.dot_dimension_numbers<[2], [2], [1], [1], [0, 0, 0, 1, 1, 1], [0], [0]>} : vector<2x1x32xf32>, vector<2x16x32xf32>, vector<2x1x16xf32> -> vector<2x1x16xf32>
    %cst_22 = arith.constant dense<0.000000e+00> : vector<2x16x1xf32>
    %19 = tpu.matmul %17, %8, %cst_22 {dimension_numbers = #tpu.dot_dimension_numbers<[2], [1], [1], [2], [0, 0, 0, 1, 1, 2], [0], [0]>} : vector<2x16x32xf32>, vector<2x32x1xf32>, vector<2x16x1xf32> -> vector<2x16x1xf32>
    %20 = vector.broadcast %19 : vector<2x16x1xf32> to vector<2x16x16xf32>
    %21 = vector.broadcast %18 : vector<2x1x16xf32> to vector<2x16x16xf32>
    %22 = arith.addf %20, %21 : vector<2x16x16xf32>
    %cst_23 = arith.constant 0.000000e+00 : f32
    %23 = vector.broadcast %cst_23 : f32 to vector<2x16x16xf32>
    %24 = arith.cmpf oge, %22, %23 : vector<2x16x16xf32>
    %cst_24 = arith.constant 2.000000e-01 : f32
    %25 = vector.broadcast %cst_24 : f32 to vector<2x16x16xf32>
    %26 = arith.mulf %25, %22 : vector<2x16x16xf32>
    %27 = arith.select %24, %22, %26 : vector<2x16x16xi1>, vector<2x16x16xf32>
    %28 = vector.shape_cast %1 : vector<16x16xf32> to vector<1x16x16xf32>
    %29 = vector.broadcast %28 : vector<1x16x16xf32> to vector<2x16x16xf32>
    %30 = arith.addf %27, %29 : vector<2x16x16xf32>
    %cst_25 = arith.constant dense<0xFF800000> : vector<2x16xf32>
    %31 = vector.multi_reduction <maximumf>, %30, %cst_25 [2] : vector<2x16x16xf32> to vector<2x16xf32>
    %32 = vector.shape_cast %31 : vector<2x16xf32> to vector<2x16x1xf32>
    %33 = vector.broadcast %32 : vector<2x16x1xf32> to vector<2x16x16xf32>
    %34 = arith.subf %30, %33 : vector<2x16x16xf32>
    %35 = math.exp %34 : vector<2x16x16xf32>
    %cst_26 = arith.constant dense<0.000000e+00> : vector<2x16xf32>
    %36 = vector.multi_reduction <add>, %35, %cst_26 [2] : vector<2x16x16xf32> to vector<2x16xf32>
    %37 = vector.shape_cast %36 : vector<2x16xf32> to vector<2x16x1xf32>
    %38 = tpu.reciprocal %37 {approx = true} : vector<2x16x1xf32> -> vector<2x16x1xf32>
    %39 = vector.broadcast %38 : vector<2x16x1xf32> to vector<2x16x16xf32>
    %40 = arith.mulf %35, %39 : vector<2x16x16xf32>
    "tpu.trace_start"() <{level = 10 : i32, message = "anj,ajd->and"}> : () -> ()
    %cst_27 = arith.constant dense<0.000000e+00> : vector<2x16x32xf32>
    %41 = tpu.matmul %40, %17, %cst_27 {dimension_numbers = #tpu.dot_dimension_numbers<[2], [1], [1], [2], [0, 0, 0, 1, 1, 2], [0], [0]>} : vector<2x16x16xf32>, vector<2x16x32xf32>, vector<2x16x32xf32> -> vector<2x16x32xf32>
    "tpu.trace_stop"() : () -> ()
    %cst_28 = arith.constant dense<0.000000e+00> : vector<16x32xf32>
    %42 = vector.multi_reduction <add>, %41, %cst_28 [0] : vector<2x16x32xf32> to vector<16x32xf32>
    %43 = vector.broadcast %5 : vector<1x32xf32> to vector<16x32xf32>
    %44 = arith.addf %42, %43 : vector<16x32xf32>
    %cst_29 = arith.constant 0.000000e+00 : f32
    %45 = vector.broadcast %cst_29 : f32 to vector<16x32xf32>
    %46 = arith.maximumf %44, %45 : vector<16x32xf32>
    %cst_30 = arith.constant dense<0.000000e+00> : vector<16x32xf32>
    %47 = tpu.matmul %46, %3, %cst_30 {dimension_numbers = #tpu.dot_dimension_numbers<[1], [0], [0], [1], [0, 0, 1, 1], [], []>} : vector<16x32xf32>, vector<32x32xf32>, vector<16x32xf32> -> vector<16x32xf32>
    %48 = vector.shape_cast %47 : vector<16x32xf32> to vector<1x16x32xf32>
    %49 = vector.broadcast %48 : vector<1x16x32xf32> to vector<2x16x32xf32>
    %50 = vector.broadcast %12 : vector<2x1x32xf32> to vector<2x16x32xf32>
    %51 = arith.mulf %49, %50 : vector<2x16x32xf32>
    %cst_31 = arith.constant dense<0.000000e+00> : vector<2x1x16xf32>
    %52 = tpu.matmul %11, %51, %cst_31 {dimension_numbers = #tpu.dot_dimension_numbers<[2], [2], [1], [1], [0, 0, 0, 1, 1, 1], [0], [0]>} : vector<2x1x32xf32>, vector<2x16x32xf32>, vector<2x1x16xf32> -> vector<2x1x16xf32>
    %cst_32 = arith.constant dense<0.000000e+00> : vector<2x16x1xf32>
    %53 = tpu.matmul %51, %9, %cst_32 {dimension_numbers = #tpu.dot_dimension_numbers<[2], [1], [1], [2], [0, 0, 0, 1, 1, 2], [0], [0]>} : vector<2x16x32xf32>, vector<2x32x1xf32>, vector<2x16x1xf32> -> vector<2x16x1xf32>
    %54 = vector.broadcast %53 : vector<2x16x1xf32> to vector<2x16x16xf32>
    %55 = vector.broadcast %52 : vector<2x1x16xf32> to vector<2x16x16xf32>
    %56 = arith.addf %54, %55 : vector<2x16x16xf32>
    %cst_33 = arith.constant 0.000000e+00 : f32
    %57 = vector.broadcast %cst_33 : f32 to vector<2x16x16xf32>
    %58 = arith.cmpf oge, %56, %57 : vector<2x16x16xf32>
    %cst_34 = arith.constant 2.000000e-01 : f32
    %59 = vector.broadcast %cst_34 : f32 to vector<2x16x16xf32>
    %60 = arith.mulf %59, %56 : vector<2x16x16xf32>
    %61 = arith.select %58, %56, %60 : vector<2x16x16xi1>, vector<2x16x16xf32>
    %62 = vector.shape_cast %1 : vector<16x16xf32> to vector<1x16x16xf32>
    %63 = vector.broadcast %62 : vector<1x16x16xf32> to vector<2x16x16xf32>
    %64 = arith.addf %61, %63 : vector<2x16x16xf32>
    %cst_35 = arith.constant dense<0xFF800000> : vector<2x16xf32>
    %65 = vector.multi_reduction <maximumf>, %64, %cst_35 [2] : vector<2x16x16xf32> to vector<2x16xf32>
    %66 = vector.shape_cast %65 : vector<2x16xf32> to vector<2x16x1xf32>
    %67 = vector.broadcast %66 : vector<2x16x1xf32> to vector<2x16x16xf32>
    %68 = arith.subf %64, %67 : vector<2x16x16xf32>
    %69 = math.exp %68 : vector<2x16x16xf32>
    %cst_36 = arith.constant dense<0.000000e+00> : vector<2x16xf32>
    %70 = vector.multi_reduction <add>, %69, %cst_36 [2] : vector<2x16x16xf32> to vector<2x16xf32>
    %71 = vector.shape_cast %70 : vector<2x16xf32> to vector<2x16x1xf32>
    %72 = tpu.reciprocal %71 {approx = true} : vector<2x16x1xf32> -> vector<2x16x1xf32>
    %73 = vector.broadcast %72 : vector<2x16x1xf32> to vector<2x16x16xf32>
    %74 = arith.mulf %69, %73 : vector<2x16x16xf32>
    "tpu.trace_start"() <{level = 10 : i32, message = "anj,ajd->and"}> : () -> ()
    %cst_37 = arith.constant dense<0.000000e+00> : vector<2x16x32xf32>
    %75 = tpu.matmul %74, %51, %cst_37 {dimension_numbers = #tpu.dot_dimension_numbers<[2], [1], [1], [2], [0, 0, 0, 1, 1, 2], [0], [0]>} : vector<2x16x16xf32>, vector<2x16x32xf32>, vector<2x16x32xf32> -> vector<2x16x32xf32>
    "tpu.trace_stop"() : () -> ()
    %cst_38 = arith.constant dense<0.000000e+00> : vector<16x32xf32>
    %76 = vector.multi_reduction <add>, %75, %cst_38 [0] : vector<2x16x32xf32> to vector<16x32xf32>
    %77 = vector.broadcast %6 : vector<1x32xf32> to vector<16x32xf32>
    %78 = arith.addf %76, %77 : vector<16x32xf32>
    %cst_39 = arith.constant 0.000000e+00 : f32
    %79 = vector.broadcast %cst_39 : f32 to vector<16x32xf32>
    %80 = arith.maximumf %78, %79 : vector<16x32xf32>
    %cst_40 = arith.constant dense<0.000000e+00> : vector<16x128xf32>
    %81 = tpu.matmul %80, %4, %cst_40 {dimension_numbers = #tpu.dot_dimension_numbers<[1], [0], [0], [1], [0, 0, 1, 1], [], []>} : vector<16x32xf32>, vector<32x128xf32>, vector<16x128xf32> -> vector<16x128xf32>
    %82 = vector.broadcast %7 : vector<1x128xf32> to vector<16x128xf32>
    %83 = arith.addf %81, %82 : vector<16x128xf32>
    %c0_41 = arith.constant 0 : index
    %c0_42 = arith.constant 0 : index
    %84 = vector.load %arg2[%c0_41, %c0_42] : memref<16x128xf32, #tpu.memory_space<vmem>>, vector<16x128xf32>
    tpu.vector_store %arg2[%c0_41, %c0_42], %83 {strides = array<i32>} : memref<16x128xf32, #tpu.memory_space<vmem>>, vector<16x128xf32>,
    return
  }
}

</mosaic_0001>

<llo_original>
// kernel: gat_forward.1
$region0: #{gat_forward.1}
  #allocation0 [shape = 'u32[]', space=smem, size = 0x4, offset = 0x4, fixed_abs, tag = 'smem constant byte address 0x4 - core index']
  #allocation1 [shape = 'u32[144,128]{1,0:T(1,128)}', space=vmem, size = 0x12000, scoped, tag = 'internal scratch']
  %s0 = inlined_call_operand.vmem [shape: f32[128,128], index: 0, kind: input, shape index: {}]
  %s1 = inlined_call_operand.vmem [shape: f32[2,56,128], index: 1, kind: input, shape index: {}]
  %s2 = inlined_call_operand.vmem [shape: f32[16,128], index: 2, kind: output, shape index: {}]
  %s3 = sld [smem:[#allocation0]]
  $region18: #{gat_forward.1} parent=0
    _
  %s5 = ssub.s32 1, %s3
  %s6 = scalar_select 0, %s5, %s3
  // Predicated region
  $region2: #{gat_forward.1} parent=0 // pred_check
    _
  $region3: #{gat_forward.1} parent=0 // pred_check_branch
    %8 = sbr.rel (0) target = $region5
  $region4: #{gat_forward.1} parent=0 // pred_region
    _
  $region5: #{gat_forward.1} parent=0 // pred_fallthru
    _
  // Predicated region
  $region6: #{gat_forward.1} parent=0 // pred_check
    _
  $region7: #{gat_forward.1} parent=0 // pred_check_branch
    %10 = sbr.rel (0) target = $region9
  $region8: #{gat_forward.1} parent=0 // pred_region
    _
  $region9: #{gat_forward.1} parent=0 // pred_fallthru
    _
  %v11 = vld [vmem:[%s0] sm:$0xff]
  %v12 = vld [vmem:[%s0 + $0x8] sm:$0xff]
  %v13 = vld [vmem:[%s0 + $0x10] sm:$0xff]
  %v14 = vld [vmem:[%s0 + $0x18] sm:$0xff]
  %v15 = vld [vmem:[%s0 + $0x20] sm:$0xff]
  %v16 = vld [vmem:[%s0 + $0x28] sm:$0xff]
  %v17 = vld [vmem:[%s0 + $0x30] sm:$0xff]
  %v18 = vld [vmem:[%s0 + $0x38] sm:$0xff]
  %v19 = vld [vmem:[%s0 + $0x40] sm:$0xff]
  %v20 = vld [vmem:[%s0 + $0x48] sm:$0xff]
  %v21 = vld [vmem:[%s0 + $0x50] sm:$0xff]
  %v22 = vld [vmem:[%s0 + $0x58] sm:$0xff]
  %v23 = vld [vmem:[%s0 + $0x60] sm:$0xff]
  %v24 = vld [vmem:[%s0 + $0x68] sm:$0x1]
  %v25 = vld [vmem:[%s0 + $0x70] sm:$0x1]
  %v26 = vld [vmem:[%s0 + $0x78] sm:$0x1]
  %v27 = vld [vmem:[%s1] sm:$0xff]
  %v28 = vld [vmem:[%s1 + $0x8] sm:$0xff]
  %v29 = vld [vmem:[%s1 + $0x10] sm:$0xff]
  %v30 = vld [vmem:[%s1 + $0x18] sm:$0xff]
  %v31 = vld [vmem:[%s1 + $0x38] sm:$0xff]
  %v32 = vld [vmem:[%s1 + $0x40] sm:$0xff]
  %v33 = vld [vmem:[%s1 + $0x48] sm:$0xff]
  %v34 = vld [vmem:[%s1 + $0x50] sm:$0xff]
  %v35 = vld [vmem:[%s1 + $0x20] sm:$0x1]
  %v36 = vld [vmem:[%s1 + $0x58] sm:$0x1]
  %v37 = vld [vmem:[%s1 + $0x28] sm:$0x1]
  %v38 = vld [vmem:[%s1 + $0x60] sm:$0x1]
  %v39 = vld [vmem:[%s1 + $0x30] sm:$0x1]
  %v40 = vld [vmem:[%s1 + $0x68] sm:$0x1]
  %vm41 = vcmask 64512
  %v43 = vsel %vm41, %v11, 0
  %v46 = vsel %vm41, %v12, 0
  %48 = vmatprep.subr.mxu0 0.0
  %49 = vmatpush1.msra.mxu0 %v15
  %50 = vmatprep.subr.mxu0 0.0
  %51 = vmatpush1.msra.mxu0 0.0
  %52 = vmatprep.subr.mxu0 0.0
  %53 = vmatpush1.msra.mxu0 0.0
  %54 = vmatprep.subr.mxu0 0.0
  %55 = vmatpush1.msra.mxu0 0.0
  %56 = vmatprep.subr.mxu0 0.0
  %57 = vmatpush1.msra.mxu0 0.0
  %58 = vmatprep.subr.mxu0 0.0
  %59 = vmatpush1.msra.mxu0 0.0
  %60 = vmatprep.subr.mxu0 0.0
  %61 = vmatpush1.msra.mxu0 0.0
  %62 = vmatprep.subr.mxu0 0.0
  %63 = vmatpush1.msra.mxu0 0.0
  %64 = vmatprep.subr.mxu0 0.0
  %65 = vmatpush1.msra.mxu0 0.0
  %66 = vmatprep.subr.mxu0 0.0
  %67 = vmatpush1.msra.mxu0 0.0
  %68 = vmatprep.subr.mxu0 0.0
  %69 = vmatpush1.msra.mxu0 0.0
  %70 = vmatprep.subr.mxu0 0.0
  %71 = vmatpush1.msra.mxu0 0.0
  %72 = vmatprep.subr.mxu0 0.0
  %73 = vmatpush1.msra.mxu0 0.0
  %74 = vmatprep.subr.mxu0 0.0
  %75 = vmatpush1.msra.mxu0 0.0
  %76 = vmatprep.subr.mxu0 0.0
  %77 = vmatpush1.msra.mxu0 0.0
  %78 = vmatprep.subr.mxu0 0.0
  %79 = vmatpush1.msra.mxu0 0.0
  %80 = vmatprep.subr.mxu0 0.0
  %81 = vmatpush1.msra.mxu0 0.0
  %82 = vmatprep.subr.mxu0 0.0
  %83 = vmatpush1.msra.mxu0 0.0
  %84 = vmatprep.subr.mxu0 0.0
  %85 = vmatpush1.msra.mxu0 0.0
  %86 = vmatprep.subr.mxu0 0.0
  %87 = vmatpush1.msra.mxu0 0.0
  %88 = vmatprep.subr.mxu0 0.0
  %89 = vmatpush1.msra.mxu0 0.0
  %90 = vmatprep.subr.mxu0 0.0
  %91 = vmatpush1.msra.mxu0 0.0
  %92 = vmatprep.subr.mxu0 0.0
  %93 = vmatpush1.msra.mxu0 0.0
  %94 = vmatprep.subr.mxu0 0.0
  %95 = vmatpush1.msra.mxu0 0.0
  %96 = vmatprep.subr.mxu0 0.0
  %97 = vmatpush1.msra.mxu0 0.0
  %98 = vmatprep.subr.mxu0 0.0
  %99 = vmatpush1.msra.mxu0 0.0
  %100 = vmatprep.subr.mxu0 0.0
  %101 = vmatpush1.msra.mxu0 0.0
  %102 = vmatprep.subr.mxu0 0.0
  %103 = vmatpush1.msra.mxu0 0.0
  %104 = vmatprep.subr.mxu0 0.0
  %105 = vmatpush1.msra.mxu0 0.0
  %106 = vmatprep.subr.mxu0 0.0
  %107 = vmatpush1.msra.mxu0 0.0
  %108 = vmatprep.subr.mxu0 0.0
  %109 = vmatpush1.msra.mxu0 0.0
  %110 = vmatprep.subr.mxu0 0.0
  %111 = vmatpush1.msra.mxu0 0.0
  %112 = vmatprep.mubr.f32.mxu0 0.0
  %113 = vmatmul.mubr.f32.gmra.mrb[0].mxu0 %v43
  %v114 = vpop.f32.mrb[0].mxu0
  %v115 = vadd.f32 0.0, %v114
  %v116 = vpop.f32.mrb[0].mxu0
  %117 = vmatprep.mubr.f32.mxu0 0.0
  %118 = vmatmul.mubr.f32.gmra.mrb[0].mxu0 %v46
  %v119 = vpop.f32.mrb[0].mxu0
  %v120 = vadd.f32 0.0, %v119
  %v121 = vpop.f32.mrb[0].mxu0
  %122 = vdwg.mxu0
  %v123 = vlaneseq
  %v124 = vshrl.u32 %v123, 7
  %v125 = vsub.s32 0, %v124
  %v126 = vrot.slane %v39, %v125
  %v127 = vlaneseq
  %v128 = vshrl.u32 %v127, 7
  %v129 = vsub.s32 0, %v128
  %v130 = vrot.slane %v40, %v129
  %v131 = vmul.f32 %v115, %v126
  %v132 = vmul.f32 %v120, %v126
  %v133 = vmul.f32 %v115, %v130
  %v134 = vmul.f32 %v120, %v130
  %vm135 = vcmask 261120
  %v137 = vsel %vm135, %v35, 0
  %v140 = vsel %vm135, %v131, 0
  %v143 = vsel %vm135, %v132, 0
  %145 = vmatprep.subr.mxu0 0.0
  %146 = vmatpush1.xpose.msra.mxu0 %v140
  %147 = vmatprep.subr.mxu0 0.0
  %148 = vmatpush1.xpose.msra.mxu0 %v143
  %149 = vmatprep.subr.mxu0 0.0
  %150 = vmatpush1.xpose.msra.mxu0 0.0
  %151 = vmatprep.subr.mxu0 0.0
  %152 = vmatpush1.xpose.msra.mxu0 0.0
  %153 = vmatprep.subr.mxu0 0.0
  %154 = vmatpush1.xpose.msra.mxu0 0.0
  %155 = vmatprep.subr.mxu0 0.0
  %156 = vmatpush1.xpose.msra.mxu0 0.0
  %157 = vmatprep.subr.mxu0 0.0
  %158 = vmatpush1.xpose.msra.mxu0 0.0
  %159 = vmatprep.subr.mxu0 0.0
  %160 = vmatpush1.xpose.msra.mxu0 0.0
  %161 = vmatprep.subr.mxu0 0.0
  %162 = vmatpush1.xpose.msra.mxu0 0.0
  %163 = vmatprep.subr.mxu0 0.0
  %164 = vmatpush1.xpose.msra.mxu0 0.0
  %165 = vmatprep.subr.mxu0 0.0
  %166 = vmatpush1.xpose.msra.mxu0 0.0
  %167 = vmatprep.subr.mxu0 0.0
  %168 = vmatpush1.xpose.msra.mxu0 0.0
  %169 = vmatprep.subr.mxu0 0.0
  %170 = vmatpush1.xpose.msra.mxu0 0.0
  %171 = vmatprep.subr.mxu0 0.0
  %172 = vmatpush1.xpose.msra.mxu0 0.0
  %173 = vmatprep.subr.mxu0 0.0
  %174 = vmatpush1.xpose.msra.mxu0 0.0
  %175 = vmatprep.subr.mxu0 0.0
  %176 = vmatpush1.xpose.msra.mxu0 0.0
  %177 = vmatprep.subr.mxu0 0.0
  %178 = vmatpush1.xpose.msra.mxu0 0.0
  %179 = vmatprep.subr.mxu0 0.0
  %180 = vmatpush1.xpose.msra.mxu0 0.0
  %181 = vmatprep.subr.mxu0 0.0
  %182 = vmatpush1.xpose.msra.mxu0 0.0
  %183 = vmatprep.subr.mxu0 0.0
  %184 = vmatpush1.xpose.msra.mxu0 0.0
  %185 = vmatprep.subr.mxu0 0.0
  %186 = vmatpush1.xpose.msra.mxu0 0.0
  %187 = vmatprep.subr.mxu0 0.0
  %188 = vmatpush1.xpose.msra.mxu0 0.0
  %189 = vmatprep.subr.mxu0 0.0
  %190 = vmatpush1.xpose.msra.mxu0 0.0
  %191 = vmatprep.subr.mxu0 0.0
  %192 = vmatpush1.xpose.msra.mxu0 0.0
  %193 = vmatprep.subr.mxu0 0.0
  %194 = vmatpush1.xpose.msra.mxu0 0.0
  %195 = vmatprep.subr.mxu0 0.0
  %196 = vmatpush1.xpose.msra.mxu0 0.0
  %197 = vmatprep.subr.mxu0 0.0
  %198 = vmatpush1.xpose.msra.mxu0 0.0
  %199 = vmatprep.subr.mxu0 0.0
  %200 = vmatpush1.xpose.msra.mxu0 0.0
  %201 = vmatprep.subr.mxu0 0.0
  %202 = vmatpush1.xpose.msra.mxu0 0.0
  %203 = vmatprep.subr.mxu0 0.0
  %204 = vmatpush1.xpose.msra.mxu0 0.0
  %205 = vmatprep.subr.mxu0 0.0
  %206 = vmatpush1.xpose.msra.mxu0 0.0
  %207 = vmatprep.subr.mxu0 0.0
  %208 = vmatpush1.xpose.msra.mxu0 0.0
  %209 = vmatprep.mubr.f32.mxu0 0.0
  %210 = vmatmul.mubr.f32.gmra.mrb[0].mxu0 %v137
  %v211 = vpop.f32.mrb[0].mxu0
  %v212 = vadd.f32 0.0, %v211
  %v213 = vpop.f32.mrb[0].mxu0
  %214 = vdwg.mxu0
  %v216 = vsel %vm135, %v36, 0
  %v219 = vsel %vm135, %v133, 0
  %v222 = vsel %vm135, %v134, 0
  %224 = vmatprep.subr.mxu0 0.0
  %225 = vmatpush1.xpose.msra.mxu0 %v219
  %226 = vmatprep.subr.mxu0 0.0
  %227 = vmatpush1.xpose.msra.mxu0 %v222
  %228 = vmatprep.subr.mxu0 0.0
  %229 = vmatpush1.xpose.msra.mxu0 0.0
  %230 = vmatprep.subr.mxu0 0.0
  %231 = vmatpush1.xpose.msra.mxu0 0.0
  %232 = vmatprep.subr.mxu0 0.0
  %233 = vmatpush1.xpose.msra.mxu0 0.0
  %234 = vmatprep.subr.mxu0 0.0
  %235 = vmatpush1.xpose.msra.mxu0 0.0
  %236 = vmatprep.subr.mxu0 0.0
  %237 = vmatpush1.xpose.msra.mxu0 0.0
  %238 = vmatprep.subr.mxu0 0.0
  %239 = vmatpush1.xpose.msra.mxu0 0.0
  %240 = vmatprep.subr.mxu0 0.0
  %241 = vmatpush1.xpose.msra.mxu0 0.0
  %242 = vmatprep.subr.mxu0 0.0
  %243 = vmatpush1.xpose.msra.mxu0 0.0
  %244 = vmatprep.subr.mxu0 0.0
  %245 = vmatpush1.xpose.msra.mxu0 0.0
  %246 = vmatprep.subr.mxu0 0.0
  %247 = vmatpush1.xpose.msra.mxu0 0.0
  %248 = vmatprep.subr.mxu0 0.0
  %249 = vmatpush1.xpose.msra.mxu0 0.0
  %250 = vmatprep.subr.mxu0 0.0
  %251 = vmatpush1.xpose.msra.mxu0 0.0
  %252 = vmatprep.subr.mxu0 0.0
  %253 = vmatpush1.xpose.msra.mxu0 0.0
  %254 = vmatprep.subr.mxu0 0.0
  %255 = vmatpush1.xpose.msra.mxu0 0.0
  %256 = vmatprep.subr.mxu0 0.0
  %257 = vmatpush1.xpose.msra.mxu0 0.0
  %258 = vmatprep.subr.mxu0 0.0
  %259 = vmatpush1.xpose.msra.mxu0 0.0
  %260 = vmatprep.subr.mxu0 0.0
  %261 = vmatpush1.xpose.msra.mxu0 0.0
  %262 = vmatprep.subr.mxu0 0.0
  %263 = vmatpush1.xpose.msra.mxu0 0.0
  %264 = vmatprep.subr.mxu0 0.0
  %265 = vmatpush1.xpose.msra.mxu0 0.0
  %266 = vmatprep.subr.mxu0 0.0
  %267 = vmatpush1.xpose.msra.mxu0 0.0
  %268 = vmatprep.subr.mxu0 0.0
  %269 = vmatpush1.xpose.msra.mxu0 0.0
  %270 = vmatprep.subr.mxu0 0.0
  %271 = vmatpush1.xpose.msra.mxu0 0.0
  %272 = vmatprep.subr.mxu0 0.0
  %273 = vmatpush1.xpose.msra.mxu0 0.0
  %274 = vmatprep.subr.mxu0 0.0
  %275 = vmatpush1.xpose.msra.mxu0 0.0
  %276 = vmatprep.subr.mxu0 0.0
  %277 = vmatpush1.xpose.msra.mxu0 0.0
  %278 = vmatprep.subr.mxu0 0.0
  %279 = vmatpush1.xpose.msra.mxu0 0.0
  %280 = vmatprep.subr.mxu0 0.0
  %281 = vmatpush1.xpose.msra.mxu0 0.0
  %282 = vmatprep.subr.mxu0 0.0
  %283 = vmatpush1.xpose.msra.mxu0 0.0
  %284 = vmatprep.subr.mxu0 0.0
  %285 = vmatpush1.xpose.msra.mxu0 0.0
  %286 = vmatprep.subr.mxu0 0.0
  %287 = vmatpush1.xpose.msra.mxu0 0.0
  %288 = vmatprep.mubr.f32.mxu0 0.0
  %289 = vmatmul.mubr.f32.gmra.mrb[0].mxu0 %v216
  %v290 = vpop.f32.mrb[0].mxu0
  %v291 = vadd.f32 0.0, %v290
  %v292 = vpop.f32.mrb[0].mxu0
  %293 = vdwg.mxu0
  %294 = vmatprep.subr.mxu0 0.0
  %295 = vmatpush1.msra.mxu0 %v27
  %296 = vmatprep.subr.mxu0 0.0
  %297 = vmatpush1.msra.mxu0 %v28
  %298 = vmatprep.subr.mxu0 0.0
  %299 = vmatpush1.msra.mxu0 %v29
  %300 = vmatprep.subr.mxu0 0.0
  %301 = vmatpush1.msra.mxu0 %v30
  %302 = vmatprep.subr.mxu0 0.0
  %303 = vmatpush1.msra.mxu0 0.0
  %304 = vmatprep.subr.mxu0 0.0
  %305 = vmatpush1.msra.mxu0 0.0
  %306 = vmatprep.subr.mxu0 0.0
  %307 = vmatpush1.msra.mxu0 0.0
  %308 = vmatprep.subr.mxu0 0.0
  %309 = vmatpush1.msra.mxu0 0.0
  %310 = vmatprep.subr.mxu0 0.0
  %311 = vmatpush1.msra.mxu0 0.0
  %312 = vmatprep.subr.mxu0 0.0
  %313 = vmatpush1.msra.mxu0 0.0
  %314 = vmatprep.subr.mxu0 0.0
  %315 = vmatpush1.msra.mxu0 0.0
  %316 = vmatprep.subr.mxu0 0.0
  %317 = vmatpush1.msra.mxu0 0.0
  %318 = vmatprep.subr.mxu0 0.0
  %319 = vmatpush1.msra.mxu0 0.0
  %320 = vmatprep.subr.mxu0 0.0
  %321 = vmatpush1.msra.mxu0 0.0
  %322 = vmatprep.subr.mxu0 0.0
  %323 = vmatpush1.msra.mxu0 0.0
  %324 = vmatprep.subr.mxu0 0.0
  %325 = vmatpush1.msra.mxu0 0.0
  %326 = vmatprep.subr.mxu0 0.0
  %327 = vmatpush1.msra.mxu0 0.0
  %328 = vmatprep.subr.mxu0 0.0
  %329 = vmatpush1.msra.mxu0 0.0
  %330 = vmatprep.subr.mxu0 0.0
  %331 = vmatpush1.msra.mxu0 0.0
  %332 = vmatprep.subr.mxu0 0.0
  %333 = vmatpush1.msra.mxu0 0.0
  %334 = vmatprep.subr.mxu0 0.0
  %335 = vmatpush1.msra.mxu0 0.0
  %336 = vmatprep.subr.mxu0 0.0
  %337 = vmatpush1.msra.mxu0 0.0
  %338 = vmatprep.subr.mxu0 0.0
  %339 = vmatpush1.msra.mxu0 0.0
  %340 = vmatprep.subr.mxu0 0.0
  %341 = vmatpush1.msra.mxu0 0.0
  %342 = vmatprep.subr.mxu0 0.0
  %343 = vmatpush1.msra.mxu0 0.0
  %344 = vmatprep.subr.mxu0 0.0
  %345 = vmatpush1.msra.mxu0 0.0
  %346 = vmatprep.subr.mxu0 0.0
  %347 = vmatpush1.msra.mxu0 0.0
  %348 = vmatprep.subr.mxu0 0.0
  %349 = vmatpush1.msra.mxu0 0.0
  %350 = vmatprep.subr.mxu0 0.0
  %351 = vmatpush1.msra.mxu0 0.0
  %352 = vmatprep.subr.mxu0 0.0
  %353 = vmatpush1.msra.mxu0 0.0
  %354 = vmatprep.subr.mxu0 0.0
  %355 = vmatpush1.msra.mxu0 0.0
  %356 = vmatprep.subr.mxu0 0.0
  %357 = vmatpush1.msra.mxu0 0.0
  %358 = vmatprep.mubr.f32.mxu0 0.0
  %359 = vmatmul.mubr.f32.gmra.mrb[0].mxu0 %v140
  %v360 = vpop.f32.mrb[0].mxu0
  %v361 = vadd.f32 0.0, %v360
  %v362 = vpop.f32.mrb[0].mxu0
  %363 = vmatprep.mubr.f32.mxu0 0.0
  %364 = vmatmul.mubr.f32.gmra.mrb[0].mxu0 %v143
  %v365 = vpop.f32.mrb[0].mxu0
  %v366 = vadd.f32 0.0, %v365
  %v367 = vpop.f32.mrb[0].mxu0
  %368 = vdwg.mxu0
  %369 = vmatprep.subr.mxu0 0.0
  %370 = vmatpush1.msra.mxu0 %v31
  %371 = vmatprep.subr.mxu0 0.0
  %372 = vmatpush1.msra.mxu0 %v32
  %373 = vmatprep.subr.mxu0 0.0
  %374 = vmatpush1.msra.mxu0 %v33
  %375 = vmatprep.subr.mxu0 0.0
  %376 = vmatpush1.msra.mxu0 %v34
  %377 = vmatprep.subr.mxu0 0.0
  %378 = vmatpush1.msra.mxu0 0.0
  %379 = vmatprep.subr.mxu0 0.0
  %380 = vmatpush1.msra.mxu0 0.0
  %381 = vmatprep.subr.mxu0 0.0
  %382 = vmatpush1.msra.mxu0 0.0
  %383 = vmatprep.subr.mxu0 0.0
  %384 = vmatpush1.msra.mxu0 0.0
  %385 = vmatprep.subr.mxu0 0.0
  %386 = vmatpush1.msra.mxu0 0.0
  %387 = vmatprep.subr.mxu0 0.0
  %388 = vmatpush1.msra.mxu0 0.0
  %389 = vmatprep.subr.mxu0 0.0
  %390 = vmatpush1.msra.mxu0 0.0
  %391 = vmatprep.subr.mxu0 0.0
  %392 = vmatpush1.msra.mxu0 0.0
  %393 = vmatprep.subr.mxu0 0.0
  %394 = vmatpush1.msra.mxu0 0.0
  %395 = vmatprep.subr.mxu0 0.0
  %396 = vmatpush1.msra.mxu0 0.0
  %397 = vmatprep.subr.mxu0 0.0
  %398 = vmatpush1.msra.mxu0 0.0
  %399 = vmatprep.subr.mxu0 0.0
  %400 = vmatpush1.msra.mxu0 0.0
  %401 = vmatprep.subr.mxu0 0.0
  %402 = vmatpush1.msra.mxu0 0.0
  %403 = vmatprep.subr.mxu0 0.0
  %404 = vmatpush1.msra.mxu0 0.0
  %405 = vmatprep.subr.mxu0 0.0
  %406 = vmatpush1.msra.mxu0 0.0
  %407 = vmatprep.subr.mxu0 0.0
  %408 = vmatpush1.msra.mxu0 0.0
  %409 = vmatprep.subr.mxu0 0.0
  %410 = vmatpush1.msra.mxu0 0.0
  %411 = vmatprep.subr.mxu0 0.0
  %412 = vmatpush1.msra.mxu0 0.0
  %413 = vmatprep.subr.mxu0 0.0
  %414 = vmatpush1.msra.mxu0 0.0
  %415 = vmatprep.subr.mxu0 0.0
  %416 = vmatpush1.msra.mxu0 0.0
  %417 = vmatprep.subr.mxu0 0.0
  %418 = vmatpush1.msra.mxu0 0.0
  %419 = vmatprep.subr.mxu0 0.0
  %420 = vmatpush1.msra.mxu0 0.0
  %421 = vmatprep.subr.mxu0 0.0
  %422 = vmatpush1.msra.mxu0 0.0
  %423 = vmatprep.subr.mxu0 0.0
  %424 = vmatpush1.msra.mxu0 0.0
  %425 = vmatprep.subr.mxu0 0.0
  %426 = vmatpush1.msra.mxu0 0.0
  %427 = vmatprep.subr.mxu0 0.0
  %428 = vmatpush1.msra.mxu0 0.0
  %429 = vmatprep.subr.mxu0 0.0
  %430 = vmatpush1.msra.mxu0 0.0
  %431 = vmatprep.subr.mxu0 0.0
  %432 = vmatpush1.msra.mxu0 0.0
  %433 = vmatprep.mubr.f32.mxu0 0.0
  %434 = vmatmul.mubr.f32.gmra.mrb[0].mxu0 %v219
  %v435 = vpop.f32.mrb[0].mxu0
  %v436 = vadd.f32 0.0, %v435
  %v437 = vpop.f32.mrb[0].mxu0
  %438 = vmatprep.mubr.f32.mxu0 0.0
  %439 = vmatmul.mubr.f32.gmra.mrb[0].mxu0 %v222
  %v440 = vpop.f32.mrb[0].mxu0
  %v441 = vadd.f32 0.0, %v440
  %v442 = vpop.f32.mrb[0].mxu0
  %443 = vdwg.mxu0
  %445 = vset.pattern.permute.xlu0 0
  %446 = vperm.xlu0 %445, %v361
  %v447 = vpop.permute.xlu0 %446
  %450 = vset.pattern.permute.xlu0 0
  %451 = vperm.xlu0 %450, %v366
  %v452 = vpop.permute.xlu0 %451
  %455 = vset.pattern.permute.xlu0 0
  %456 = vperm.xlu0 %455, %v436
  %v457 = vpop.permute.xlu0 %456
  %460 = vset.pattern.permute.xlu0 0
  %461 = vperm.xlu0 %460, %v441
  %v462 = vpop.permute.xlu0 %461
  %v464 = vlaneseq
  %v465 = vshrl.u32 %v464, 7
  %v466 = vsub.s32 0, %v465
  %v467 = vrot.slane %v212, %v466
  %v468 = vlaneseq
  %v469 = vshrl.u32 %v468, 7
  %v470 = vsub.s32 0, %v469
  %v471 = vrot.slane %v291, %v470
  %v472 = vadd.f32 %v447, %v467
  %v473 = vadd.f32 %v452, %v467
  %v474 = vadd.f32 %v457, %v471
  %v475 = vadd.f32 %v462, %v471
  %vm476 = vcmp.ge.f32.partialorder %v472, 0.0
  %vm477 = vcmp.ge.f32.partialorder %v473, 0.0
  %vm478 = vcmp.ge.f32.partialorder %v474, 0.0
  %vm479 = vcmp.ge.f32.partialorder %v475, 0.0
  %v480 = vmul.f32 %v472, 0.2
  %v481 = vmul.f32 %v473, 0.2
  %v482 = vmul.f32 %v474, 0.2
  %v483 = vmul.f32 %v475, 0.2
  %v484 = vsel %vm476, %v472, %v480
  %v485 = vsel %vm477, %v473, %v481
  %v486 = vsel %vm478, %v474, %v482
  %v487 = vsel %vm479, %v475, %v483
  %v488 = vadd.f32 %v484, %v13
  %v489 = vadd.f32 %v485, %v14
  %v490 = vadd.f32 %v486, %v13
  %v491 = vadd.f32 %v487, %v14
  %vm492 = vcmask 130048
  %v493 = vsel %vm492, %v488, -inf
  %494 = vmax.xlane.f32.xlu0 %v493
  %v495 = vpop.xlane.xlu0 %494
  %v496 = vsel %vm492, %v489, -inf
  %497 = vmax.xlane.f32.xlu0 %v496
  %v498 = vpop.xlane.xlu0 %497
  %v499 = vsel %vm492, %v490, -inf
  %500 = vmax.xlane.f32.xlu0 %v499
  %v501 = vpop.xlane.xlu0 %500
  %v502 = vsel %vm492, %v491, -inf
  %503 = vmax.xlane.f32.xlu0 %v502
  %v504 = vpop.xlane.xlu0 %503
  %v505 = vsub.f32 %v488, %v495
  %v506 = vsub.f32 %v489, %v498
  %v507 = vsub.f32 %v490, %v501
  %v508 = vsub.f32 %v491, %v504
  %v509 = vmul.f32 %v505, 1.442695
  %v510 = vpow.pop %v509
  %v511 = vmul.f32 %v506, 1.442695
  %v512 = vpow.pop %v511
  %v513 = vmul.f32 %v507, 1.442695
  %v514 = vpow.pop %v513
  %v515 = vmul.f32 %v508, 1.442695
  %v516 = vpow.pop %v515
  %v517 = vsel %vm492, %v510, 0.0
  %518 = vadd.xlane.f32.xlu0 %v517
  %v519 = vpop.xlane.xlu0 %518
  %v520 = vsel %vm492, %v512, 0.0
  %521 = vadd.xlane.f32.xlu0 %v520
  %v522 = vpop.xlane.xlu0 %521
  %v523 = vsel %vm492, %v514, 0.0
  %524 = vadd.xlane.f32.xlu0 %v523
  %v525 = vpop.xlane.xlu0 %524
  %v526 = vsel %vm492, %v516, 0.0
  %527 = vadd.xlane.f32.xlu0 %v526
  %v528 = vpop.xlane.xlu0 %527
  %v529 = vrcp.pop %v519
  %v530 = vrcp.pop %v522
  %v531 = vrcp.pop %v525
  %v532 = vrcp.pop %v528
  %v533 = vmul.f32 %v510, %v529
  %v534 = vmul.f32 %v512, %v530
  %v535 = vmul.f32 %v514, %v531
  %v536 = vmul.f32 %v516, %v532
  %v538 = vsel %vm492, %v533, 0
  %v541 = vsel %vm492, %v534, 0
  %543 = vmatprep.subr.mxu0 0.0
  %544 = vmatpush1.msra.mxu0 %v131
  %545 = vmatprep.subr.mxu0 0.0
  %546 = vmatpush1.msra.mxu0 %v132
  %547 = vmatprep.subr.mxu0 0.0
  %548 = vmatpush1.msra.mxu0 0.0
  %549 = vmatprep.subr.mxu0 0.0
  %550 = vmatpush1.msra.mxu0 0.0
  %551 = vmatprep.subr.mxu0 0.0
  %552 = vmatpush1.msra.mxu0 0.0
  %553 = vmatprep.subr.mxu0 0.0
  %554 = vmatpush1.msra.mxu0 0.0
  %555 = vmatprep.subr.mxu0 0.0
  %556 = vmatpush1.msra.mxu0 0.0
  %557 = vmatprep.subr.mxu0 0.0
  %558 = vmatpush1.msra.mxu0 0.0
  %559 = vmatprep.subr.mxu0 0.0
  %560 = vmatpush1.msra.mxu0 0.0
  %561 = vmatprep.subr.mxu0 0.0
  %562 = vmatpush1.msra.mxu0 0.0
  %563 = vmatprep.subr.mxu0 0.0
  %564 = vmatpush1.msra.mxu0 0.0
  %565 = vmatprep.subr.mxu0 0.0
  %566 = vmatpush1.msra.mxu0 0.0
  %567 = vmatprep.subr.mxu0 0.0
  %568 = vmatpush1.msra.mxu0 0.0
  %569 = vmatprep.subr.mxu0 0.0
  %570 = vmatpush1.msra.mxu0 0.0
  %571 = vmatprep.subr.mxu0 0.0
  %572 = vmatpush1.msra.mxu0 0.0
  %573 = vmatprep.subr.mxu0 0.0
  %574 = vmatpush1.msra.mxu0 0.0
  %575 = vmatprep.subr.mxu0 0.0
  %576 = vmatpush1.msra.mxu0 0.0
  %577 = vmatprep.subr.mxu0 0.0
  %578 = vmatpush1.msra.mxu0 0.0
  %579 = vmatprep.subr.mxu0 0.0
  %580 = vmatpush1.msra.mxu0 0.0
  %581 = vmatprep.subr.mxu0 0.0
  %582 = vmatpush1.msra.mxu0 0.0
  %583 = vmatprep.subr.mxu0 0.0
  %584 = vmatpush1.msra.mxu0 0.0
  %585 = vmatprep.subr.mxu0 0.0
  %586 = vmatpush1.msra.mxu0 0.0
  %587 = vmatprep.subr.mxu0 0.0
  %588 = vmatpush1.msra.mxu0 0.0
  %589 = vmatprep.subr.mxu0 0.0
  %590 = vmatpush1.msra.mxu0 0.0
  %591 = vmatprep.subr.mxu0 0.0
  %592 = vmatpush1.msra.mxu0 0.0
  %593 = vmatprep.subr.mxu0 0.0
  %594 = vmatpush1.msra.mxu0 0.0
  %595 = vmatprep.subr.mxu0 0.0
  %596 = vmatpush1.msra.mxu0 0.0
  %597 = vmatprep.subr.mxu0 0.0
  %598 = vmatpush1.msra.mxu0 0.0
  %599 = vmatprep.subr.mxu0 0.0
  %600 = vmatpush1.msra.mxu0 0.0
  %601 = vmatprep.subr.mxu0 0.0
  %602 = vmatpush1.msra.mxu0 0.0
  %603 = vmatprep.subr.mxu0 0.0
  %604 = vmatpush1.msra.mxu0 0.0
  %605 = vmatprep.subr.mxu0 0.0
  %606 = vmatpush1.msra.mxu0 0.0
  %607 = vmatprep.mubr.f32.mxu0 0.0
  %608 = vmatmul.mubr.f32.gmra.mrb[0].mxu0 %v538
  %v609 = vpop.f32.mrb[0].mxu0
  %v610 = vadd.f32 0.0, %v609
  %v611 = vpop.f32.mrb[0].mxu0
  %612 = vmatprep.mubr.f32.mxu0 0.0
  %613 = vmatmul.mubr.f32.gmra.mrb[0].mxu0 %v541
  %v614 = vpop.f32.mrb[0].mxu0
  %v615 = vadd.f32 0.0, %v614
  %v616 = vpop.f32.mrb[0].mxu0
  %617 = vdwg.mxu0
  %v619 = vsel %vm492, %v535, 0
  %v622 = vsel %vm492, %v536, 0
  %624 = vmatprep.subr.mxu0 0.0
  %625 = vmatpush1.msra.mxu0 %v133
  %626 = vmatprep.subr.mxu0 0.0
  %627 = vmatpush1.msra.mxu0 %v134
  %628 = vmatprep.subr.mxu0 0.0
  %629 = vmatpush1.msra.mxu0 0.0
  %630 = vmatprep.subr.mxu0 0.0
  %631 = vmatpush1.msra.mxu0 0.0
  %632 = vmatprep.subr.mxu0 0.0
  %633 = vmatpush1.msra.mxu0 0.0
  %634 = vmatprep.subr.mxu0 0.0
  %635 = vmatpush1.msra.mxu0 0.0
  %636 = vmatprep.subr.mxu0 0.0
  %637 = vmatpush1.msra.mxu0 0.0
  %638 = vmatprep.subr.mxu0 0.0
  %639 = vmatpush1.msra.mxu0 0.0
  %640 = vmatprep.subr.mxu0 0.0
  %641 = vmatpush1.msra.mxu0 0.0
  %642 = vmatprep.subr.mxu0 0.0
  %643 = vmatpush1.msra.mxu0 0.0
  %644 = vmatprep.subr.mxu0 0.0
  %645 = vmatpush1.msra.mxu0 0.0
  %646 = vmatprep.subr.mxu0 0.0
  %647 = vmatpush1.msra.mxu0 0.0
  %648 = vmatprep.subr.mxu0 0.0
  %649 = vmatpush1.msra.mxu0 0.0
  %650 = vmatprep.subr.mxu0 0.0
  %651 = vmatpush1.msra.mxu0 0.0
  %652 = vmatprep.subr.mxu0 0.0
  %653 = vmatpush1.msra.mxu0 0.0
  %654 = vmatprep.subr.mxu0 0.0
  %655 = vmatpush1.msra.mxu0 0.0
  %656 = vmatprep.subr.mxu0 0.0
  %657 = vmatpush1.msra.mxu0 0.0
  %658 = vmatprep.subr.mxu0 0.0
  %659 = vmatpush1.msra.mxu0 0.0
  %660 = vmatprep.subr.mxu0 0.0
  %661 = vmatpush1.msra.mxu0 0.0
  %662 = vmatprep.subr.mxu0 0.0
  %663 = vmatpush1.msra.mxu0 0.0
  %664 = vmatprep.subr.mxu0 0.0
  %665 = vmatpush1.msra.mxu0 0.0
  %666 = vmatprep.subr.mxu0 0.0
  %667 = vmatpush1.msra.mxu0 0.0
  %668 = vmatprep.subr.mxu0 0.0
  %669 = vmatpush1.msra.mxu0 0.0
  %670 = vmatprep.subr.mxu0 0.0
  %671 = vmatpush1.msra.mxu0 0.0
  %672 = vmatprep.subr.mxu0 0.0
  %673 = vmatpush1.msra.mxu0 0.0
  %674 = vmatprep.subr.mxu0 0.0
  %675 = vmatpush1.msra.mxu0 0.0
  %676 = vmatprep.subr.mxu0 0.0
  %677 = vmatpush1.msra.mxu0 0.0
  %678 = vmatprep.subr.mxu0 0.0
  %679 = vmatpush1.msra.mxu0 0.0
  %680 = vmatprep.subr.mxu0 0.0
  %681 = vmatpush1.msra.mxu0 0.0
  %682 = vmatprep.subr.mxu0 0.0
  %683 = vmatpush1.msra.mxu0 0.0
  %684 = vmatprep.subr.mxu0 0.0
  %685 = vmatpush1.msra.mxu0 0.0
  %686 = vmatprep.subr.mxu0 0.0
  %687 = vmatpush1.msra.mxu0 0.0
  %688 = vmatprep.mubr.f32.mxu0 0.0
  %689 = vmatmul.mubr.f32.gmra.mrb[0].mxu0 %v619
  %v690 = vpop.f32.mrb[0].mxu0
  %v691 = vadd.f32 0.0, %v690
  %v692 = vpop.f32.mrb[0].mxu0
  %693 = vmatprep.mubr.f32.mxu0 0.0
  %694 = vmatmul.mubr.f32.gmra.mrb[0].mxu0 %v622
  %v695 = vpop.f32.mrb[0].mxu0
  %v696 = vadd.f32 0.0, %v695
  %v697 = vpop.f32.mrb[0].mxu0
  %698 = vdwg.mxu0
  %v699 = vsel %vm135, %v610, 0.0
  %v700 = vsel %vm135, %v691, 0.0
  %v701 = vadd.f32 %v699, %v700
  %v702 = vsel %vm135, %v615, 0.0
  %v703 = vsel %vm135, %v696, 0.0
  %v704 = vadd.f32 %v702, %v703
  %v705 = vlaneseq
  %v706 = vshrl.u32 %v705, 7
  %v707 = vsub.s32 0, %v706
  %v708 = vrot.slane %v24, %v707
  %v709 = vadd.f32 %v701, %v708
  %v710 = vadd.f32 %v704, %v708
  %v711 = vmax.f32 %v709, 0.0
  %v712 = vmax.f32 %v710, 0.0
  %v714 = vsel %vm135, %v711, 0
  %v717 = vsel %vm135, %v712, 0
  %719 = vmatprep.subr.mxu0 0.0
  %720 = vmatpush1.msra.mxu0 %v16
  %721 = vmatprep.subr.mxu0 0.0
  %722 = vmatpush1.msra.mxu0 %v17
  %723 = vmatprep.subr.mxu0 0.0
  %724 = vmatpush1.msra.mxu0 %v18
  %725 = vmatprep.subr.mxu0 0.0
  %726 = vmatpush1.msra.mxu0 %v19
  %727 = vmatprep.subr.mxu0 0.0
  %728 = vmatpush1.msra.mxu0 0.0
  %729 = vmatprep.subr.mxu0 0.0
  %730 = vmatpush1.msra.mxu0 0.0
  %731 = vmatprep.subr.mxu0 0.0
  %732 = vmatpush1.msra.mxu0 0.0
  %733 = vmatprep.subr.mxu0 0.0
  %734 = vmatpush1.msra.mxu0 0.0
  %735 = vmatprep.subr.mxu0 0.0
  %736 = vmatpush1.msra.mxu0 0.0
  %737 = vmatprep.subr.mxu0 0.0
  %738 = vmatpush1.msra.mxu0 0.0
  %739 = vmatprep.subr.mxu0 0.0
  %740 = vmatpush1.msra.mxu0 0.0
  %741 = vmatprep.subr.mxu0 0.0
  %742 = vmatpush1.msra.mxu0 0.0
  %743 = vmatprep.subr.mxu0 0.0
  %744 = vmatpush1.msra.mxu0 0.0
  %745 = vmatprep.subr.mxu0 0.0
  %746 = vmatpush1.msra.mxu0 0.0
  %747 = vmatprep.subr.mxu0 0.0
  %748 = vmatpush1.msra.mxu0 0.0
  %749 = vmatprep.subr.mxu0 0.0
  %750 = vmatpush1.msra.mxu0 0.0
  %751 = vmatprep.subr.mxu0 0.0
  %752 = vmatpush1.msra.mxu0 0.0
  %753 = vmatprep.subr.mxu0 0.0
  %754 = vmatpush1.msra.mxu0 0.0
  %755 = vmatprep.subr.mxu0 0.0
  %756 = vmatpush1.msra.mxu0 0.0
  %757 = vmatprep.subr.mxu0 0.0
  %758 = vmatpush1.msra.mxu0 0.0
  %759 = vmatprep.subr.mxu0 0.0
  %760 = vmatpush1.msra.mxu0 0.0
  %761 = vmatprep.subr.mxu0 0.0
  %762 = vmatpush1.msra.mxu0 0.0
  %763 = vmatprep.subr.mxu0 0.0
  %764 = vmatpush1.msra.mxu0 0.0
  %765 = vmatprep.subr.mxu0 0.0
  %766 = vmatpush1.msra.mxu0 0.0
  %767 = vmatprep.subr.mxu0 0.0
  %768 = vmatpush1.msra.mxu0 0.0
  %769 = vmatprep.subr.mxu0 0.0
  %770 = vmatpush1.msra.mxu0 0.0
  %771 = vmatprep.subr.mxu0 0.0
  %772 = vmatpush1.msra.mxu0 0.0
  %773 = vmatprep.subr.mxu0 0.0
  %774 = vmatpush1.msra.mxu0 0.0
  %775 = vmatprep.subr.mxu0 0.0
  %776 = vmatpush1.msra.mxu0 0.0
  %777 = vmatprep.subr.mxu0 0.0
  %778 = vmatpush1.msra.mxu0 0.0
  %779 = vmatprep.subr.mxu0 0.0
  %780 = vmatpush1.msra.mxu0 0.0
  %781 = vmatprep.subr.mxu0 0.0
  %782 = vmatpush1.msra.mxu0 0.0
  %783 = vmatprep.mubr.f32.mxu0 0.0
  %784 = vmatmul.mubr.f32.gmra.mrb[0].mxu0 %v714
  %v785 = vpop.f32.mrb[0].mxu0
  %v786 = vadd.f32 0.0, %v785
  %v787 = vpop.f32.mrb[0].mxu0
  %788 = vmatprep.mubr.f32.mxu0 0.0
  %789 = vmatmul.mubr.f32.gmra.mrb[0].mxu0 %v717
  %v790 = vpop.f32.mrb[0].mxu0
  %v791 = vadd.f32 0.0, %v790
  %v792 = vpop.f32.mrb[0].mxu0
  %793 = vdwg.mxu0
  %v794 = vmul.f32 %v786, %v126
  %v795 = vmul.f32 %v791, %v126
  %v796 = vmul.f32 %v786, %v130
  %v797 = vmul.f32 %v791, %v130
  %v799 = vsel %vm135, %v37, 0
  %v802 = vsel %vm135, %v794, 0
  %v805 = vsel %vm135, %v795, 0
  %807 = vmatprep.subr.mxu0 0.0
  %808 = vmatpush1.xpose.msra.mxu0 %v802
  %809 = vmatprep.subr.mxu0 0.0
  %810 = vmatpush1.xpose.msra.mxu0 %v805
  %811 = vmatprep.subr.mxu0 0.0
  %812 = vmatpush1.xpose.msra.mxu0 0.0
  %813 = vmatprep.subr.mxu0 0.0
  %814 = vmatpush1.xpose.msra.mxu0 0.0
  %815 = vmatprep.subr.mxu0 0.0
  %816 = vmatpush1.xpose.msra.mxu0 0.0
  %817 = vmatprep.subr.mxu0 0.0
  %818 = vmatpush1.xpose.msra.mxu0 0.0
  %819 = vmatprep.subr.mxu0 0.0
  %820 = vmatpush1.xpose.msra.mxu0 0.0
  %821 = vmatprep.subr.mxu0 0.0
  %822 = vmatpush1.xpose.msra.mxu0 0.0
  %823 = vmatprep.subr.mxu0 0.0
  %824 = vmatpush1.xpose.msra.mxu0 0.0
  %825 = vmatprep.subr.mxu0 0.0
  %826 = vmatpush1.xpose.msra.mxu0 0.0
  %827 = vmatprep.subr.mxu0 0.0
  %828 = vmatpush1.xpose.msra.mxu0 0.0
  %829 = vmatprep.subr.mxu0 0.0
  %830 = vmatpush1.xpose.msra.mxu0 0.0
  %831 = vmatprep.subr.mxu0 0.0
  %832 = vmatpush1.xpose.msra.mxu0 0.0
  %833 = vmatprep.subr.mxu0 0.0
  %834 = vmatpush1.xpose.msra.mxu0 0.0
  %835 = vmatprep.subr.mxu0 0.0
  %836 = vmatpush1.xpose.msra.mxu0 0.0
  %837 = vmatprep.subr.mxu0 0.0
  %838 = vmatpush1.xpose.msra.mxu0 0.0
  %839 = vmatprep.subr.mxu0 0.0
  %840 = vmatpush1.xpose.msra.mxu0 0.0
  %841 = vmatprep.subr.mxu0 0.0
  %842 = vmatpush1.xpose.msra.mxu0 0.0
  %843 = vmatprep.subr.mxu0 0.0
  %844 = vmatpush1.xpose.msra.mxu0 0.0
  %845 = vmatprep.subr.mxu0 0.0
  %846 = vmatpush1.xpose.msra.mxu0 0.0
  %847 = vmatprep.subr.mxu0 0.0
  %848 = vmatpush1.xpose.msra.mxu0 0.0
  %849 = vmatprep.subr.mxu0 0.0
  %850 = vmatpush1.xpose.msra.mxu0 0.0
  %851 = vmatprep.subr.mxu0 0.0
  %852 = vmatpush1.xpose.msra.mxu0 0.0
  %853 = vmatprep.subr.mxu0 0.0
  %854 = vmatpush1.xpose.msra.mxu0 0.0
  %855 = vmatprep.subr.mxu0 0.0
  %856 = vmatpush1.xpose.msra.mxu0 0.0
  %857 = vmatprep.subr.mxu0 0.0
  %858 = vmatpush1.xpose.msra.mxu0 0.0
  %859 = vmatprep.subr.mxu0 0.0
  %860 = vmatpush1.xpose.msra.mxu0 0.0
  %861 = vmatprep.subr.mxu0 0.0
  %862 = vmatpush1.xpose.msra.mxu0 0.0
  %863 = vmatprep.subr.mxu0 0.0
  %864 = vmatpush1.xpose.msra.mxu0 0.0
  %865 = vmatprep.subr.mxu0 0.0
  %866 = vmatpush1.xpose.msra.mxu0 0.0
  %867 = vmatprep.subr.mxu0 0.0
  %868 = vmatpush1.xpose.msra.mxu0 0.0
  %869 = vmatprep.subr.mxu0 0.0
  %870 = vmatpush1.xpose.msra.mxu0 0.0
  %871 = vmatprep.mubr.f32.mxu0 0.0
  %872 = vmatmul.mubr.f32.gmra.mrb[0].mxu0 %v799
  %v873 = vpop.f32.mrb[0].mxu0
  %v874 = vadd.f32 0.0, %v873
  %v875 = vpop.f32.mrb[0].mxu0
  %876 = vdwg.mxu0
  %v878 = vsel %vm135, %v38, 0
  %v881 = vsel %vm135, %v796, 0
  %v884 = vsel %vm135, %v797, 0
  %886 = vmatprep.subr.mxu0 0.0
  %887 = vmatpush1.xpose.msra.mxu0 %v881
  %888 = vmatprep.subr.mxu0 0.0
  %889 = vmatpush1.xpose.msra.mxu0 %v884
  %890 = vmatprep.subr.mxu0 0.0
  %891 = vmatpush1.xpose.msra.mxu0 0.0
  %892 = vmatprep.subr.mxu0 0.0
  %893 = vmatpush1.xpose.msra.mxu0 0.0
  %894 = vmatprep.subr.mxu0 0.0
  %895 = vmatpush1.xpose.msra.mxu0 0.0
  %896 = vmatprep.subr.mxu0 0.0
  %897 = vmatpush1.xpose.msra.mxu0 0.0
  %898 = vmatprep.subr.mxu0 0.0
  %899 = vmatpush1.xpose.msra.mxu0 0.0
  %900 = vmatprep.subr.mxu0 0.0
  %901 = vmatpush1.xpose.msra.mxu0 0.0
  %902 = vmatprep.subr.mxu0 0.0
  %903 = vmatpush1.xpose.msra.mxu0 0.0
  %904 = vmatprep.subr.mxu0 0.0
  %905 = vmatpush1.xpose.msra.mxu0 0.0
  %906 = vmatprep.subr.mxu0 0.0
  %907 = vmatpush1.xpose.msra.mxu0 0.0
  %908 = vmatprep.subr.mxu0 0.0
  %909 = vmatpush1.xpose.msra.mxu0 0.0
  %910 = vmatprep.subr.mxu0 0.0
  %911 = vmatpush1.xpose.msra.mxu0 0.0
  %912 = vmatprep.subr.mxu0 0.0
  %913 = vmatpush1.xpose.msra.mxu0 0.0
  %914 = vmatprep.subr.mxu0 0.0
  %915 = vmatpush1.xpose.msra.mxu0 0.0
  %916 = vmatprep.subr.mxu0 0.0
  %917 = vmatpush1.xpose.msra.mxu0 0.0
  %918 = vmatprep.subr.mxu0 0.0
  %919 = vmatpush1.xpose.msra.mxu0 0.0
  %920 = vmatprep.subr.mxu0 0.0
  %921 = vmatpush1.xpose.msra.mxu0 0.0
  %922 = vmatprep.subr.mxu0 0.0
  %923 = vmatpush1.xpose.msra.mxu0 0.0
  %924 = vmatprep.subr.mxu0 0.0
  %925 = vmatpush1.xpose.msra.mxu0 0.0
  %926 = vmatprep.subr.mxu0 0.0
  %927 = vmatpush1.xpose.msra.mxu0 0.0
  %928 = vmatprep.subr.mxu0 0.0
  %929 = vmatpush1.xpose.msra.mxu0 0.0
  %930 = vmatprep.subr.mxu0 0.0
  %931 = vmatpush1.xpose.msra.mxu0 0.0
  %932 = vmatprep.subr.mxu0 0.0
  %933 = vmatpush1.xpose.msra.mxu0 0.0
  %934 = vmatprep.subr.mxu0 0.0
  %935 = vmatpush1.xpose.msra.mxu0 0.0
  %936 = vmatprep.subr.mxu0 0.0
  %937 = vmatpush1.xpose.msra.mxu0 0.0
  %938 = vmatprep.subr.mxu0 0.0
  %939 = vmatpush1.xpose.msra.mxu0 0.0
  %940 = vmatprep.subr.mxu0 0.0
  %941 = vmatpush1.xpose.msra.mxu0 0.0
  %942 = vmatprep.subr.mxu0 0.0
  %943 = vmatpush1.xpose.msra.mxu0 0.0
  %944 = vmatprep.subr.mxu0 0.0
  %945 = vmatpush1.xpose.msra.mxu0 0.0
  %946 = vmatprep.subr.mxu0 0.0
  %947 = vmatpush1.xpose.msra.mxu0 0.0
  %948 = vmatprep.subr.mxu0 0.0
  %949 = vmatpush1.xpose.msra.mxu0 0.0
  %950 = vmatprep.mubr.f32.mxu0 0.0
  %951 = vmatmul.mubr.f32.gmra.mrb[0].mxu0 %v878
  %v952 = vpop.f32.mrb[0].mxu0
  %v953 = vadd.f32 0.0, %v952
  %v954 = vpop.f32.mrb[0].mxu0
  %955 = vdwg.mxu0
  %960 = vrot.lane.b32.xlu0 %v27, 127
  %v961 = vpop.permute.xlu0 %960
  %962 = vrot.lane.b32.xlu0 %v28, 127
  %v963 = vpop.permute.xlu0 %962
  %964 = vrot.lane.b32.xlu0 %v29, 127
  %v965 = vpop.permute.xlu0 %964
  %966 = vrot.lane.b32.xlu0 %v30, 127
  %v967 = vpop.permute.xlu0 %966
  %972 = vmatprep.subr.mxu0 0.0
  %973 = vmatpush1.msra.mxu0 %v961
  %974 = vmatprep.subr.mxu0 0.0
  %975 = vmatpush1.msra.mxu0 %v963
  %976 = vmatprep.subr.mxu0 0.0
  %977 = vmatpush1.msra.mxu0 %v965
  %978 = vmatprep.subr.mxu0 0.0
  %979 = vmatpush1.msra.mxu0 %v967
  %980 = vmatprep.subr.mxu0 0.0
  %981 = vmatpush1.msra.mxu0 0.0
  %982 = vmatprep.subr.mxu0 0.0
  %983 = vmatpush1.msra.mxu0 0.0
  %984 = vmatprep.subr.mxu0 0.0
  %985 = vmatpush1.msra.mxu0 0.0
  %986 = vmatprep.subr.mxu0 0.0
  %987 = vmatpush1.msra.mxu0 0.0
  %988 = vmatprep.subr.mxu0 0.0
  %989 = vmatpush1.msra.mxu0 0.0
  %990 = vmatprep.subr.mxu0 0.0
  %991 = vmatpush1.msra.mxu0 0.0
  %992 = vmatprep.subr.mxu0 0.0
  %993 = vmatpush1.msra.mxu0 0.0
  %994 = vmatprep.subr.mxu0 0.0
  %995 = vmatpush1.msra.mxu0 0.0
  %996 = vmatprep.subr.mxu0 0.0
  %997 = vmatpush1.msra.mxu0 0.0
  %998 = vmatprep.subr.mxu0 0.0
  %999 = vmatpush1.msra.mxu0 0.0
  %1000 = vmatprep.subr.mxu0 0.0
  %1001 = vmatpush1.msra.mxu0 0.0
  %1002 = vmatprep.subr.mxu0 0.0
  %1003 = vmatpush1.msra.mxu0 0.0
  %1004 = vmatprep.subr.mxu0 0.0
  %1005 = vmatpush1.msra.mxu0 0.0
  %1006 = vmatprep.subr.mxu0 0.0
  %1007 = vmatpush1.msra.mxu0 0.0
  %1008 = vmatprep.subr.mxu0 0.0
  %1009 = vmatpush1.msra.mxu0 0.0
  %1010 = vmatprep.subr.mxu0 0.0
  %1011 = vmatpush1.msra.mxu0 0.0
  %1012 = vmatprep.subr.mxu0 0.0
  %1013 = vmatpush1.msra.mxu0 0.0
  %1014 = vmatprep.subr.mxu0 0.0
  %1015 = vmatpush1.msra.mxu0 0.0
  %1016 = vmatprep.subr.mxu0 0.0
  %1017 = vmatpush1.msra.mxu0 0.0
  %1018 = vmatprep.subr.mxu0 0.0
  %1019 = vmatpush1.msra.mxu0 0.0
  %1020 = vmatprep.subr.mxu0 0.0
  %1021 = vmatpush1.msra.mxu0 0.0
  %1022 = vmatprep.subr.mxu0 0.0
  %1023 = vmatpush1.msra.mxu0 0.0
  %1024 = vmatprep.subr.mxu0 0.0
  %1025 = vmatpush1.msra.mxu0 0.0
  %1026 = vmatprep.subr.mxu0 0.0
  %1027 = vmatpush1.msra.mxu0 0.0
  %1028 = vmatprep.subr.mxu0 0.0
  %1029 = vmatpush1.msra.mxu0 0.0
  %1030 = vmatprep.subr.mxu0 0.0
  %1031 = vmatpush1.msra.mxu0 0.0
  %1032 = vmatprep.subr.mxu0 0.0
  %1033 = vmatpush1.msra.mxu0 0.0
  %1034 = vmatprep.subr.mxu0 0.0
  %1035 = vmatpush1.msra.mxu0 0.0
  %1036 = vmatprep.mubr.f32.mxu0 0.0
  %1037 = vmatmul.mubr.f32.gmra.mrb[0].mxu0 %v802
  %v1038 = vpop.f32.mrb[0].mxu0
  %v1039 = vadd.f32 0.0, %v1038
  %v1040 = vpop.f32.mrb[0].mxu0
  %1041 = vmatprep.mubr.f32.mxu0 0.0
  %1042 = vmatmul.mubr.f32.gmra.mrb[0].mxu0 %v805
  %v1043 = vpop.f32.mrb[0].mxu0
  %v1044 = vadd.f32 0.0, %v1043
  %v1045 = vpop.f32.mrb[0].mxu0
  %1046 = vdwg.mxu0
  %1051 = vrot.lane.b32.xlu0 %v31, 127
  %v1052 = vpop.permute.xlu0 %1051
  %1053 = vrot.lane.b32.xlu0 %v32, 127
  %v1054 = vpop.permute.xlu0 %1053
  %1055 = vrot.lane.b32.xlu0 %v33, 127
  %v1056 = vpop.permute.xlu0 %1055
  %1057 = vrot.lane.b32.xlu0 %v34, 127
  %v1058 = vpop.permute.xlu0 %1057
  %1063 = vmatprep.subr.mxu0 0.0
  %1064 = vmatpush1.msra.mxu0 %v1052
  %1065 = vmatprep.subr.mxu0 0.0
  %1066 = vmatpush1.msra.mxu0 %v1054
  %1067 = vmatprep.subr.mxu0 0.0
  %1068 = vmatpush1.msra.mxu0 %v1056
  %1069 = vmatprep.subr.mxu0 0.0
  %1070 = vmatpush1.msra.mxu0 %v1058
  %1071 = vmatprep.subr.mxu0 0.0
  %1072 = vmatpush1.msra.mxu0 0.0
  %1073 = vmatprep.subr.mxu0 0.0
  %1074 = vmatpush1.msra.mxu0 0.0
  %1075 = vmatprep.subr.mxu0 0.0
  %1076 = vmatpush1.msra.mxu0 0.0
  %1077 = vmatprep.subr.mxu0 0.0
  %1078 = vmatpush1.msra.mxu0 0.0
  %1079 = vmatprep.subr.mxu0 0.0
  %1080 = vmatpush1.msra.mxu0 0.0
  %1081 = vmatprep.subr.mxu0 0.0
  %1082 = vmatpush1.msra.mxu0 0.0
  %1083 = vmatprep.subr.mxu0 0.0
  %1084 = vmatpush1.msra.mxu0 0.0
  %1085 = vmatprep.subr.mxu0 0.0
  %1086 = vmatpush1.msra.mxu0 0.0
  %1087 = vmatprep.subr.mxu0 0.0
  %1088 = vmatpush1.msra.mxu0 0.0
  %1089 = vmatprep.subr.mxu0 0.0
  %1090 = vmatpush1.msra.mxu0 0.0
  %1091 = vmatprep.subr.mxu0 0.0
  %1092 = vmatpush1.msra.mxu0 0.0
  %1093 = vmatprep.subr.mxu0 0.0
  %1094 = vmatpush1.msra.mxu0 0.0
  %1095 = vmatprep.subr.mxu0 0.0
  %1096 = vmatpush1.msra.mxu0 0.0
  %1097 = vmatprep.subr.mxu0 0.0
  %1098 = vmatpush1.msra.mxu0 0.0
  %1099 = vmatprep.subr.mxu0 0.0
  %1100 = vmatpush1.msra.mxu0 0.0
  %1101 = vmatprep.subr.mxu0 0.0
  %1102 = vmatpush1.msra.mxu0 0.0
  %1103 = vmatprep.subr.mxu0 0.0
  %1104 = vmatpush1.msra.mxu0 0.0
  %1105 = vmatprep.subr.mxu0 0.0
  %1106 = vmatpush1.msra.mxu0 0.0
  %1107 = vmatprep.subr.mxu0 0.0
  %1108 = vmatpush1.msra.mxu0 0.0
  %1109 = vmatprep.subr.mxu0 0.0
  %1110 = vmatpush1.msra.mxu0 0.0
  %1111 = vmatprep.subr.mxu0 0.0
  %1112 = vmatpush1.msra.mxu0 0.0
  %1113 = vmatprep.subr.mxu0 0.0
  %1114 = vmatpush1.msra.mxu0 0.0
  %1115 = vmatprep.subr.mxu0 0.0
  %1116 = vmatpush1.msra.mxu0 0.0
  %1117 = vmatprep.subr.mxu0 0.0
  %1118 = vmatpush1.msra.mxu0 0.0
  %1119 = vmatprep.subr.mxu0 0.0
  %1120 = vmatpush1.msra.mxu0 0.0
  %1121 = vmatprep.subr.mxu0 0.0
  %1122 = vmatpush1.msra.mxu0 0.0
  %1123 = vmatprep.subr.mxu0 0.0
  %1124 = vmatpush1.msra.mxu0 0.0
  %1125 = vmatprep.subr.mxu0 0.0
  %1126 = vmatpush1.msra.mxu0 0.0
  %1127 = vmatprep.mubr.f32.mxu0 0.0
  %1128 = vmatmul.mubr.f32.gmra.mrb[0].mxu0 %v881
  %v1129 = vpop.f32.mrb[0].mxu0
  %v1130 = vadd.f32 0.0, %v1129
  %v1131 = vpop.f32.mrb[0].mxu0
  %1132 = vmatprep.mubr.f32.mxu0 0.0
  %1133 = vmatmul.mubr.f32.gmra.mrb[0].mxu0 %v884
  %v1134 = vpop.f32.mrb[0].mxu0
  %v1135 = vadd.f32 0.0, %v1134
  %v1136 = vpop.f32.mrb[0].mxu0
  %1137 = vdwg.mxu0
  %1139 = vset.pattern.permute.xlu0 0
  %1140 = vperm.xlu0 %1139, %v1039
  %v1141 = vpop.permute.xlu0 %1140
  %1144 = vset.pattern.permute.xlu0 0
  %1145 = vperm.xlu0 %1144, %v1044
  %v1146 = vpop.permute.xlu0 %1145
  %1149 = vset.pattern.permute.xlu0 0
  %1150 = vperm.xlu0 %1149, %v1130
  %v1151 = vpop.permute.xlu0 %1150
  %1154 = vset.pattern.permute.xlu0 0
  %1155 = vperm.xlu0 %1154, %v1135
  %v1156 = vpop.permute.xlu0 %1155
  %v1158 = vlaneseq
  %v1159 = vshrl.u32 %v1158, 7
  %v1160 = vsub.s32 0, %v1159
  %v1161 = vrot.slane %v874, %v1160
  %v1162 = vlaneseq
  %v1163 = vshrl.u32 %v1162, 7
  %v1164 = vsub.s32 0, %v1163
  %v1165 = vrot.slane %v953, %v1164
  %v1166 = vadd.f32 %v1141, %v1161
  %v1167 = vadd.f32 %v1146, %v1161
  %v1168 = vadd.f32 %v1151, %v1165
  %v1169 = vadd.f32 %v1156, %v1165
  %vm1170 = vcmp.ge.f32.partialorder %v1166, 0.0
  %vm1171 = vcmp.ge.f32.partialorder %v1167, 0.0
  %vm1172 = vcmp.ge.f32.partialorder %v1168, 0.0
  %vm1173 = vcmp.ge.f32.partialorder %v1169, 0.0
  %v1174 = vmul.f32 %v1166, 0.2
  %v1175 = vmul.f32 %v1167, 0.2
  %v1176 = vmul.f32 %v1168, 0.2
  %v1177 = vmul.f32 %v1169, 0.2
  %v1178 = vsel %vm1170, %v1166, %v1174
  %v1179 = vsel %vm1171, %v1167, %v1175
  %v1180 = vsel %vm1172, %v1168, %v1176
  %v1181 = vsel %vm1173, %v1169, %v1177
  %v1182 = vadd.f32 %v1178, %v13
  %v1183 = vadd.f32 %v1179, %v14
  %v1184 = vadd.f32 %v1180, %v13
  %v1185 = vadd.f32 %v1181, %v14
  %v1186 = vsel %vm492, %v1182, -inf
  %1187 = vmax.xlane.f32.xlu0 %v1186
  %v1188 = vpop.xlane.xlu0 %1187
  %v1189 = vsel %vm492, %v1183, -inf
  %1190 = vmax.xlane.f32.xlu0 %v1189
  %v1191 = vpop.xlane.xlu0 %1190
  %v1192 = vsel %vm492, %v1184, -inf
  %1193 = vmax.xlane.f32.xlu0 %v1192
  %v1194 = vpop.xlane.xlu0 %1193
  %v1195 = vsel %vm492, %v1185, -inf
  %1196 = vmax.xlane.f32.xlu0 %v1195
  %v1197 = vpop.xlane.xlu0 %1196
  %v1198 = vsub.f32 %v1182, %v1188
  %v1199 = vsub.f32 %v1183, %v1191
  %v1200 = vsub.f32 %v1184, %v1194
  %v1201 = vsub.f32 %v1185, %v1197
  %v1202 = vmul.f32 %v1198, 1.442695
  %v1203 = vpow.pop %v1202
  %v1204 = vmul.f32 %v1199, 1.442695
  %v1205 = vpow.pop %v1204
  %v1206 = vmul.f32 %v1200, 1.442695
  %v1207 = vpow.pop %v1206
  %v1208 = vmul.f32 %v1201, 1.442695
  %v1209 = vpow.pop %v1208
  %v1210 = vsel %vm492, %v1203, 0.0
  %1211 = vadd.xlane.f32.xlu0 %v1210
  %v1212 = vpop.xlane.xlu0 %1211
  %v1213 = vsel %vm492, %v1205, 0.0
  %1214 = vadd.xlane.f32.xlu0 %v1213
  %v1215 = vpop.xlane.xlu0 %1214
  %v1216 = vsel %vm492, %v1207, 0.0
  %1217 = vadd.xlane.f32.xlu0 %v1216
  %v1218 = vpop.xlane.xlu0 %1217
  %v1219 = vsel %vm492, %v1209, 0.0
  %1220 = vadd.xlane.f32.xlu0 %v1219
  %v1221 = vpop.xlane.xlu0 %1220
  %v1222 = vrcp.pop %v1212
  %v1223 = vrcp.pop %v1215
  %v1224 = vrcp.pop %v1218
  %v1225 = vrcp.pop %v1221
  %v1226 = vmul.f32 %v1203, %v1222
  %v1227 = vmul.f32 %v1205, %v1223
  %v1228 = vmul.f32 %v1207, %v1224
  %v1229 = vmul.f32 %v1209, %v1225
  %v1231 = vsel %vm492, %v1226, 0
  %v1234 = vsel %vm492, %v1227, 0
  %1236 = vmatprep.subr.mxu0 0.0
  %1237 = vmatpush1.msra.mxu0 %v794
  %1238 = vmatprep.subr.mxu0 0.0
  %1239 = vmatpush1.msra.mxu0 %v795
  %1240 = vmatprep.subr.mxu0 0.0
  %1241 = vmatpush1.msra.mxu0 0.0
  %1242 = vmatprep.subr.mxu0 0.0
  %1243 = vmatpush1.msra.mxu0 0.0
  %1244 = vmatprep.subr.mxu0 0.0
  %1245 = vmatpush1.msra.mxu0 0.0
  %1246 = vmatprep.subr.mxu0 0.0
  %1247 = vmatpush1.msra.mxu0 0.0
  %1248 = vmatprep.subr.mxu0 0.0
  %1249 = vmatpush1.msra.mxu0 0.0
  %1250 = vmatprep.subr.mxu0 0.0
  %1251 = vmatpush1.msra.mxu0 0.0
  %1252 = vmatprep.subr.mxu0 0.0
  %1253 = vmatpush1.msra.mxu0 0.0
  %1254 = vmatprep.subr.mxu0 0.0
  %1255 = vmatpush1.msra.mxu0 0.0
  %1256 = vmatprep.subr.mxu0 0.0
  %1257 = vmatpush1.msra.mxu0 0.0
  %1258 = vmatprep.subr.mxu0 0.0
  %1259 = vmatpush1.msra.mxu0 0.0
  %1260 = vmatprep.subr.mxu0 0.0
  %1261 = vmatpush1.msra.mxu0 0.0
  %1262 = vmatprep.subr.mxu0 0.0
  %1263 = vmatpush1.msra.mxu0 0.0
  %1264 = vmatprep.subr.mxu0 0.0
  %1265 = vmatpush1.msra.mxu0 0.0
  %1266 = vmatprep.subr.mxu0 0.0
  %1267 = vmatpush1.msra.mxu0 0.0
  %1268 = vmatprep.subr.mxu0 0.0
  %1269 = vmatpush1.msra.mxu0 0.0
  %1270 = vmatprep.subr.mxu0 0.0
  %1271 = vmatpush1.msra.mxu0 0.0
  %1272 = vmatprep.subr.mxu0 0.0
  %1273 = vmatpush1.msra.mxu0 0.0
  %1274 = vmatprep.subr.mxu0 0.0
  %1275 = vmatpush1.msra.mxu0 0.0
  %1276 = vmatprep.subr.mxu0 0.0
  %1277 = vmatpush1.msra.mxu0 0.0
  %1278 = vmatprep.subr.mxu0 0.0
  %1279 = vmatpush1.msra.mxu0 0.0
  %1280 = vmatprep.subr.mxu0 0.0
  %1281 = vmatpush1.msra.mxu0 0.0
  %1282 = vmatprep.subr.mxu0 0.0
  %1283 = vmatpush1.msra.mxu0 0.0
  %1284 = vmatprep.subr.mxu0 0.0
  %1285 = vmatpush1.msra.mxu0 0.0
  %1286 = vmatprep.subr.mxu0 0.0
  %1287 = vmatpush1.msra.mxu0 0.0
  %1288 = vmatprep.subr.mxu0 0.0
  %1289 = vmatpush1.msra.mxu0 0.0
  %1290 = vmatprep.subr.mxu0 0.0
  %1291 = vmatpush1.msra.mxu0 0.0
  %1292 = vmatprep.subr.mxu0 0.0
  %1293 = vmatpush1.msra.mxu0 0.0
  %1294 = vmatprep.subr.mxu0 0.0
  %1295 = vmatpush1.msra.mxu0 0.0
  %1296 = vmatprep.subr.mxu0 0.0
  %1297 = vmatpush1.msra.mxu0 0.0
  %1298 = vmatprep.subr.mxu0 0.0
  %1299 = vmatpush1.msra.mxu0 0.0
  %1300 = vmatprep.mubr.f32.mxu0 0.0
  %1301 = vmatmul.mubr.f32.gmra.mrb[0].mxu0 %v1231
  %v1302 = vpop.f32.mrb[0].mxu0
  %v1303 = vadd.f32 0.0, %v1302
  %v1304 = vpop.f32.mrb[0].mxu0
  %1305 = vmatprep.mubr.f32.mxu0 0.0
  %1306 = vmatmul.mubr.f32.gmra.mrb[0].mxu0 %v1234
  %v1307 = vpop.f32.mrb[0].mxu0
  %v1308 = vadd.f32 0.0, %v1307
  %v1309 = vpop.f32.mrb[0].mxu0
  %1310 = vdwg.mxu0
  %v1312 = vsel %vm492, %v1228, 0
  %v1315 = vsel %vm492, %v1229, 0
  %1317 = vmatprep.subr.mxu0 0.0
  %1318 = vmatpush1.msra.mxu0 %v796
  %1319 = vmatprep.subr.mxu0 0.0
  %1320 = vmatpush1.msra.mxu0 %v797
  %1321 = vmatprep.subr.mxu0 0.0
  %1322 = vmatpush1.msra.mxu0 0.0
  %1323 = vmatprep.subr.mxu0 0.0
  %1324 = vmatpush1.msra.mxu0 0.0
  %1325 = vmatprep.subr.mxu0 0.0
  %1326 = vmatpush1.msra.mxu0 0.0
  %1327 = vmatprep.subr.mxu0 0.0
  %1328 = vmatpush1.msra.mxu0 0.0
  %1329 = vmatprep.subr.mxu0 0.0
  %1330 = vmatpush1.msra.mxu0 0.0
  %1331 = vmatprep.subr.mxu0 0.0
  %1332 = vmatpush1.msra.mxu0 0.0
  %1333 = vmatprep.subr.mxu0 0.0
  %1334 = vmatpush1.msra.mxu0 0.0
  %1335 = vmatprep.subr.mxu0 0.0
  %1336 = vmatpush1.msra.mxu0 0.0
  %1337 = vmatprep.subr.mxu0 0.0
  %1338 = vmatpush1.msra.mxu0 0.0
  %1339 = vmatprep.subr.mxu0 0.0
  %1340 = vmatpush1.msra.mxu0 0.0
  %1341 = vmatprep.subr.mxu0 0.0
  %1342 = vmatpush1.msra.mxu0 0.0
  %1343 = vmatprep.subr.mxu0 0.0
  %1344 = vmatpush1.msra.mxu0 0.0
  %1345 = vmatprep.subr.mxu0 0.0
  %1346 = vmatpush1.msra.mxu0 0.0
  %1347 = vmatprep.subr.mxu0 0.0
  %1348 = vmatpush1.msra.mxu0 0.0
  %1349 = vmatprep.subr.mxu0 0.0
  %1350 = vmatpush1.msra.mxu0 0.0
  %1351 = vmatprep.subr.mxu0 0.0
  %1352 = vmatpush1.msra.mxu0 0.0
  %1353 = vmatprep.subr.mxu0 0.0
  %1354 = vmatpush1.msra.mxu0 0.0
  %1355 = vmatprep.subr.mxu0 0.0
  %1356 = vmatpush1.msra.mxu0 0.0
  %1357 = vmatprep.subr.mxu0 0.0
  %1358 = vmatpush1.msra.mxu0 0.0
  %1359 = vmatprep.subr.mxu0 0.0
  %1360 = vmatpush1.msra.mxu0 0.0
  %1361 = vmatprep.subr.mxu0 0.0
  %1362 = vmatpush1.msra.mxu0 0.0
  %1363 = vmatprep.subr.mxu0 0.0
  %1364 = vmatpush1.msra.mxu0 0.0
  %1365 = vmatprep.subr.mxu0 0.0
  %1366 = vmatpush1.msra.mxu0 0.0
  %1367 = vmatprep.subr.mxu0 0.0
  %1368 = vmatpush1.msra.mxu0 0.0
  %1369 = vmatprep.subr.mxu0 0.0
  %1370 = vmatpush1.msra.mxu0 0.0
  %1371 = vmatprep.subr.mxu0 0.0
  %1372 = vmatpush1.msra.mxu0 0.0
  %1373 = vmatprep.subr.mxu0 0.0
  %1374 = vmatpush1.msra.mxu0 0.0
  %1375 = vmatprep.subr.mxu0 0.0
  %1376 = vmatpush1.msra.mxu0 0.0
  %1377 = vmatprep.subr.mxu0 0.0
  %1378 = vmatpush1.msra.mxu0 0.0
  %1379 = vmatprep.subr.mxu0 0.0
  %1380 = vmatpush1.msra.mxu0 0.0
  %1381 = vmatprep.mubr.f32.mxu0 0.0
  %1382 = vmatmul.mubr.f32.gmra.mrb[0].mxu0 %v1312
  %v1383 = vpop.f32.mrb[0].mxu0
  %v1384 = vadd.f32 0.0, %v1383
  %v1385 = vpop.f32.mrb[0].mxu0
  %1386 = vmatprep.mubr.f32.mxu0 0.0
  %1387 = vmatmul.mubr.f32.gmra.mrb[0].mxu0 %v1315
  %v1388 = vpop.f32.mrb[0].mxu0
  %v1389 = vadd.f32 0.0, %v1388
  %v1390 = vpop.f32.mrb[0].mxu0
  %1391 = vdwg.mxu0
  %v1392 = vsel %vm135, %v1303, 0.0
  %v1393 = vsel %vm135, %v1384, 0.0
  %v1394 = vadd.f32 %v1392, %v1393
  %v1395 = vsel %vm135, %v1308, 0.0
  %v1396 = vsel %vm135, %v1389, 0.0
  %v1397 = vadd.f32 %v1395, %v1396
  %v1398 = vlaneseq
  %v1399 = vshrl.u32 %v1398, 7
  %v1400 = vsub.s32 0, %v1399
  %v1401 = vrot.slane %v25, %v1400
  %v1402 = vadd.f32 %v1394, %v1401
  %v1403 = vadd.f32 %v1397, %v1401
  %v1404 = vmax.f32 %v1402, 0.0
  %v1405 = vmax.f32 %v1403, 0.0
  %v1406 = vlaneseq
  %v1407 = vshrl.u32 %v1406, 7
  %v1408 = vsub.s32 0, %v1407
  %v1409 = vrot.slane %v26, %v1408
  %v1411 = vsel %vm135, %v1404, 0
  %v1414 = vsel %vm135, %v1405, 0
  %1416 = vmatprep.subr.mxu0 0.0
  %1417 = vmatpush1.msra.mxu0 %v20
  %1418 = vmatprep.subr.mxu0 0.0
  %1419 = vmatpush1.msra.mxu0 %v21
  %1420 = vmatprep.subr.mxu0 0.0
  %1421 = vmatpush1.msra.mxu0 %v22
  %1422 = vmatprep.subr.mxu0 0.0
  %1423 = vmatpush1.msra.mxu0 %v23
  %1424 = vmatprep.subr.mxu0 0.0
  %1425 = vmatpush1.msra.mxu0 0.0
  %1426 = vmatprep.subr.mxu0 0.0
  %1427 = vmatpush1.msra.mxu0 0.0
  %1428 = vmatprep.subr.mxu0 0.0
  %1429 = vmatpush1.msra.mxu0 0.0
  %1430 = vmatprep.subr.mxu0 0.0
  %1431 = vmatpush1.msra.mxu0 0.0
  %1432 = vmatprep.subr.mxu0 0.0
  %1433 = vmatpush1.msra.mxu0 0.0
  %1434 = vmatprep.subr.mxu0 0.0
  %1435 = vmatpush1.msra.mxu0 0.0
  %1436 = vmatprep.subr.mxu0 0.0
  %1437 = vmatpush1.msra.mxu0 0.0
  %1438 = vmatprep.subr.mxu0 0.0
  %1439 = vmatpush1.msra.mxu0 0.0
  %1440 = vmatprep.subr.mxu0 0.0
  %1441 = vmatpush1.msra.mxu0 0.0
  %1442 = vmatprep.subr.mxu0 0.0
  %1443 = vmatpush1.msra.mxu0 0.0
  %1444 = vmatprep.subr.mxu0 0.0
  %1445 = vmatpush1.msra.mxu0 0.0
  %1446 = vmatprep.subr.mxu0 0.0
  %1447 = vmatpush1.msra.mxu0 0.0
  %1448 = vmatprep.subr.mxu0 0.0
  %1449 = vmatpush1.msra.mxu0 0.0
  %1450 = vmatprep.subr.mxu0 0.0
  %1451 = vmatpush1.msra.mxu0 0.0
  %1452 = vmatprep.subr.mxu0 0.0
  %1453 = vmatpush1.msra.mxu0 0.0
  %1454 = vmatprep.subr.mxu0 0.0
  %1455 = vmatpush1.msra.mxu0 0.0
  %1456 = vmatprep.subr.mxu0 0.0
  %1457 = vmatpush1.msra.mxu0 0.0
  %1458 = vmatprep.subr.mxu0 0.0
  %1459 = vmatpush1.msra.mxu0 0.0
  %1460 = vmatprep.subr.mxu0 0.0
  %1461 = vmatpush1.msra.mxu0 0.0
  %1462 = vmatprep.subr.mxu0 0.0
  %1463 = vmatpush1.msra.mxu0 0.0
  %1464 = vmatprep.subr.mxu0 0.0
  %1465 = vmatpush1.msra.mxu0 0.0
  %1466 = vmatprep.subr.mxu0 0.0
  %1467 = vmatpush1.msra.mxu0 0.0
  %1468 = vmatprep.subr.mxu0 0.0
  %1469 = vmatpush1.msra.mxu0 0.0
  %1470 = vmatprep.subr.mxu0 0.0
  %1471 = vmatpush1.msra.mxu0 0.0
  %1472 = vmatprep.subr.mxu0 0.0
  %1473 = vmatpush1.msra.mxu0 0.0
  %1474 = vmatprep.subr.mxu0 0.0
  %1475 = vmatpush1.msra.mxu0 0.0
  %1476 = vmatprep.subr.mxu0 0.0
  %1477 = vmatpush1.msra.mxu0 0.0
  %1478 = vmatprep.subr.mxu0 0.0
  %1479 = vmatpush1.msra.mxu0 0.0
  %1480 = vmatprep.mubr.f32.mxu0 0.0
  %1481 = vmatmul.mubr.f32.gmra.mrb[0].mxu0 %v1411
  %v1482 = vpop.f32.mrb[0].mxu0
  %v1483 = vadd.f32 %v1409, %v1482
  %v1484 = vpop.f32.mrb[0].mxu0
  %1485 = vmatprep.mubr.f32.mxu0 0.0
  %1486 = vmatmul.mubr.f32.gmra.mrb[0].mxu0 %v1414
  %v1487 = vpop.f32.mrb[0].mxu0
  %v1488 = vadd.f32 %v1409, %v1487
  %v1489 = vpop.f32.mrb[0].mxu0
  %1490 = vdwg.mxu0
  %1491 = vst [vmem:[%s2] sm:$0xff] %v1483
  %1492 = vst [vmem:[%s2 + $0x8] sm:$0xff] %v1488
  // Predicated region
  $region10: #{gat_forward.1} parent=0 // pred_check
    _
  $region11: #{gat_forward.1} parent=0 // pred_check_branch
    %1494 = sbr.rel (0) target = $region13
  $region12: #{gat_forward.1} parent=0 // pred_region
    _
  $region13: #{gat_forward.1} parent=0 // pred_fallthru
    _
  // Predicated region
  $region14: #{gat_forward.1} parent=0 // pred_check
    _
  $region15: #{gat_forward.1} parent=0 // pred_check_branch
    %1496 = sbr.rel (0) target = $region17
  $region16: #{gat_forward.1} parent=0 // pred_region
    _
  $region17: #{gat_forward.1} parent=0 // pred_fallthru
    _

</llo_original>
